<compile_context>
chip_gen: v6e
topology: v6e:2x2x1
jax: 0.10.0
libtpu: 0.0.40
codegen_flags: <defaults>
</compile_context>

<pallas_src>
import functools
import math

import jax
import jax.numpy as jnp
from jax import lax
from jax.experimental import pallas as pl
from jax.experimental.pallas import tpu as pltpu


def _round_up(x, m):
    return (x + m - 1) // m * m


def _vmem_capacity_bytes():
    """Per-core VMEM capacity; conservative 64 MiB (v7x) fallback."""
    try:
        cap = getattr(pltpu.get_tpu_info(), "vmem_capacity_bytes", None)
        if cap:
            return int(cap)
    except Exception:
        pass
    return 64 << 20


def _pick_tile_rows(rows, cap):
    """Row-tile size: multiple of 8, <= cap, and >= 2 grid steps when possible
    so the "parallel" M axis can occupy both v7x TensorCores."""
    cap = max(8, (cap // 8) * 8)
    t = min(cap, _round_up(rows, 8))
    if t >= 16 and _round_up(rows, 8) <= cap:
        t = min(t, _round_up((rows + 1) // 2, 8))
    return max(t, 8)


# ----------------------------------------------------------------------------
# Pallas kernels
# ----------------------------------------------------------------------------
def _bn_relu_kernel(x_ref, scale_ref, bias_ref, o_ref):
    # x: (TR, COLS); scale/bias: (1, COLS) broadcast over rows.
    o_ref[...] = jnp.maximum(
        x_ref[...].astype(jnp.float32) * scale_ref[...] + bias_ref[...], 0.0
    ).astype(o_ref.dtype)


def _conv_gemm_kernel(*refs, has_epilogue, has_residual, has_shortcut,
                      center_start, cin):
    """One deep MXU GEMM per M-tile.

    refs = (patches, weights[, scale, bias][, residual][, w_sc],
            out[, shortcut_out])
      patches  : (TM, Kp)           compute dtype
      weights  : (Kp, Cout_p)       compute dtype, resident (constant index map)
      scale    : (1, Cout_p) f32    folded BN2 scale        (if has_epilogue)
      bias     : (1, Cout_p) f32    folded BN2 bias         (if has_epilogue)
      residual : (TM, Cout_p)       compute dtype           (if has_residual)
      w_sc     : (Cin, Cout_p)      compute dtype, resident (if has_shortcut)
      out      : (TM, Cout_p)
      sc_out   : (TM, Cout_p)                               (if has_shortcut)
    """
    it = iter(refs)
    p_ref = next(it)
    w_ref = next(it)
    s_ref = b_ref = r_ref = wsc_ref = None
    if has_epilogue:
        s_ref, b_ref = next(it), next(it)
    if has_residual:
        r_ref = next(it)
    if has_shortcut:
        wsc_ref = next(it)
    o_ref = next(it)
    sc_ref = next(it) if has_shortcut else None

    acc = jnp.dot(p_ref[...], w_ref[...], preferred_element_type=jnp.float32)
    if has_epilogue:
        # BN2 + ReLU epilogue is applied BEFORE any residual add (review fix).
        acc = jnp.maximum(acc * s_ref[...] + b_ref[...], 0.0)
    if has_residual:
        acc = acc + r_ref[...].astype(jnp.float32)
    o_ref[...] = acc.astype(o_ref.dtype)

    if has_shortcut:
        # 1x1 convShortcut reuses the center-tap columns of the patch matrix.
        ctr = p_ref[:, center_start:center_start + cin]
        sc_ref[...] = jnp.dot(
            ctr, wsc_ref[...], preferred_element_type=jnp.float32
        ).astype(sc_ref.dtype)


# ----------------------------------------------------------------------------
# Wrappers around pallas_call
# ----------------------------------------------------------------------------
def bn_relu(x_nhwc, gamma, beta, mean, var, eps=1e-5, out_dtype=None,
            tile_rows_cap=1024):
    """Fused eval-mode BatchNorm + ReLU over M = N*H*W.

    Lane-dense: when C is not a multiple of 128, the (M, C) view is refolded to
    (M/k, k*C) with k*C a multiple of 128 so stores are full-lane vst."""
    n, h, w, c = x_nhwc.shape
    out_dtype = out_dtype or x_nhwc.dtype
    scale = (gamma / jnp.sqrt(var + eps)).astype(jnp.float32)
    bias = (beta - mean * scale).astype(jnp.float32)

    m = n * h * w
    k = 1 if c % 128 == 0 else 128 // math.gcd(c, 128)
    cols = k * c
    rows = -(-m // k)
    tr = _pick_tile_rows(rows, tile_rows_cap)
    rows_p = _round_up(rows, tr)
    m_p = rows_p * k

    x2d = x_nhwc.reshape(m, c)
    if m_p != m:
        x2d = jnp.pad(x2d, ((0, m_p - m), (0, 0)))
    xf = x2d.reshape(rows_p, cols)
    sc = jnp.tile(scale, k).reshape(1, cols)
    bi = jnp.tile(bias, k).reshape(1, cols)

    in_item = jnp.dtype(x_nhwc.dtype).itemsize
    out_item = jnp.dtype(out_dtype).itemsize
    step_bytes = 2 * tr * cols * (in_item + out_item) + 4 * cols * 4
    cap = _vmem_capacity_bytes()
    limit = int(min(cap, max(2 * step_bytes, 32 << 20)))

    out = pl.pallas_call(
        _bn_relu_kernel,
        out_shape=jax.ShapeDtypeStruct((rows_p, cols), out_dtype),
        grid=(rows_p // tr,),
        in_specs=[
            pl.BlockSpec((tr, cols), lambda i: (i, 0)),
            pl.BlockSpec((1, cols), lambda i: (0, 0)),
            pl.BlockSpec((1, cols), lambda i: (0, 0)),
        ],
        out_specs=pl.BlockSpec((tr, cols), lambda i: (i, 0)),
        compiler_params=pltpu.CompilerParams(
            dimension_semantics=("parallel",), vmem_limit_bytes=limit),
    )(xf, sc, bi)
    return out.reshape(m_p, c)[:m].reshape(n, h, w, c)


def conv2d_gemm(x_nhwc, w_hwio, stride, *, cout_pad=None,
                residual_2d=None, epi_scale=None, epi_bias=None,
                shortcut_w=None, compute_dtype=jnp.float32, out_dtype=None,
                tile_m_cap=512):
    """Conv2d (no bias, pad=(K-1)//2) as one deep GEMM per M-tile.

    Optional fusions:
      * folded BN + ReLU epilogue on the conv output      (epi_scale/epi_bias)
      * residual add, applied AFTER the epilogue          (residual_2d)
      * the 1x1 convShortcut as a second output reusing the center-tap columns
        of the same patch matrix                          (shortcut_w)

    The primary output keeps its channel dim padded to `cout_pad` (lane-dense);
    the caller slices back to the real channel count only at the block's end.
    Returns (out4d_padded_channels, shortcut_2d_or_None).
    """
    n, h, w, cx = x_nhwc.shape
    kh, kw, cin_w, cout = w_hwio.shape
    assert cx >= cin_w
    if cx > cin_w:
        # Carry the padded channel layout through the block: zero-pad the
        # weight's input-channel rows (tiny) instead of slicing activations.
        w_hwio = jnp.pad(w_hwio, ((0, 0), (0, 0), (0, cx - cin_w), (0, 0)))
    cin = cx
    pad = (kh - 1) // 2
    ho = (h + 2 * pad - kh) // stride + 1
    wo = (w + 2 * pad - kw) // stride + 1
    m = n * ho * wo
    kcin = kh * kw * cin
    cout_p = cout_pad if cout_pad is not None else _round_up(cout, 128)
    out_dtype = out_dtype or compute_dtype

    # ---- im2col patch matrix (M, KH*KW*Cin) --------------------------------
    # Cast to compute dtype BEFORE the pad/slice/concat so the duplicated patch
    # matrix is written/read through HBM at half width for bf16.
    # TODO(synk): replace this JAX-side im2col (KH*KW-fold HBM duplication of
    #             the conv input) with an in-kernel halo-tile conv.
    xc = x_nhwc.astype(compute_dtype)
    if pad:
        xc = jnp.pad(xc, ((0, 0), (pad, pad), (pad, pad), (0, 0)))
    taps = []
    for ih in range(kh):
        for iw in range(kw):
            t = lax.slice(
                xc, (0, ih, iw, 0),
                (n, ih + (ho - 1) * stride + 1, iw + (wo - 1) * stride + 1, cin),
                (1, stride, stride, 1))
            taps.append(t.reshape(m, cin))
    patches = jnp.concatenate(taps, axis=-1)            # (m, kcin)
    wmat = w_hwio.reshape(kcin, cout).astype(compute_dtype)

    # ---- K alignment: pad contraction dim to 128 only when cheap ----------
    kcin_p = _round_up(kcin, 128)
    if (kcin_p - kcin) * 8 > kcin:      # >12.5% extra patch bytes: skip
        kcin_p = kcin

    # ---- generation-aware M tiling + explicit VMEM budget ------------------
    itemsize_c = jnp.dtype(compute_dtype).itemsize
    itemsize_o = jnp.dtype(out_dtype).itemsize
    has_epi = epi_scale is not None
    has_res = residual_2d is not None
    has_sc = shortcut_w is not None

    cap = _vmem_capacity_bytes()
    fixed = 2 * kcin_p * cout_p * itemsize_c            # resident weights (2 bufs worst case)
    if has_epi:
        fixed += 2 * 2 * cout_p * 4
    if has_sc:
        fixed += 2 * cin * cout_p * itemsize_c
    per_row = 2 * kcin_p * itemsize_c + 2 * cout_p * itemsize_o
    if has_res:
        per_row += 2 * cout_p * itemsize_c
    if has_sc:
        per_row += 2 * cout_p * itemsize_o
    avail = max(int(cap * 0.6) - fixed, 8 * per_row)
    tm = _pick_tile_rows(m, min(tile_m_cap, avail // per_row))
    mp = _round_up(m, tm)
    vmem_limit = int(min(cap, max(fixed + per_row * tm + (8 << 20), 32 << 20)))

    # ---- assemble operands --------------------------------------------------
    if mp != m or kcin_p != kcin:
        patches = jnp.pad(patches, ((0, mp - m), (0, kcin_p - kcin)))
    wmat = jnp.pad(wmat, ((0, kcin_p - kcin), (0, cout_p - cout)))

    args = [patches, wmat]
    in_specs = [
        pl.BlockSpec((tm, kcin_p), lambda i: (i, 0)),
        # Constant index map -> weights stay resident across the M grid.
        pl.BlockSpec((kcin_p, cout_p), lambda i: (0, 0)),
    ]
    if has_epi:
        s = jnp.pad(epi_scale.astype(jnp.float32), (0, cout_p - cout)).reshape(1, cout_p)
        b = jnp.pad(epi_bias.astype(jnp.float32), (0, cout_p - cout)).reshape(1, cout_p)
        args += [s, b]
        in_specs += [pl.BlockSpec((1, cout_p), lambda i: (0, 0)),
                     pl.BlockSpec((1, cout_p), lambda i: (0, 0))]
    if has_res:
        # NOTE: the residual travels in compute dtype; with bf16 this trades a
        # little precision for half the residual HBM bytes.
        r = residual_2d.astype(compute_dtype)
        assert r.shape[1] == cout_p
        if r.shape[0] != mp:
            r = jnp.pad(r, ((0, mp - r.shape[0]), (0, 0)))
        args += [r]
        in_specs += [pl.BlockSpec((tm, cout_p), lambda i: (i, 0))]
    if has_sc:
        wsc = shortcut_w.reshape(shortcut_w.shape[2], cout).astype(compute_dtype)
        wsc = jnp.pad(wsc, ((0, 0), (0, cout_p - cout)))
        args += [wsc]
        in_specs += [pl.BlockSpec((wsc.shape[0], cout_p), lambda i: (0, 0))]

    out_shapes = [jax.ShapeDtypeStruct((mp, cout_p), out_dtype)]
    out_specs = [pl.BlockSpec((tm, cout_p), lambda i: (i, 0))]
    if has_sc:
        out_shapes.append(jax.ShapeDtypeStruct((mp, cout_p), out_dtype))
        out_specs.append(pl.BlockSpec((tm, cout_p), lambda i: (i, 0)))

    center_start = ((kh // 2) * kw + (kw // 2)) * cin
    kernel = functools.partial(
        _conv_gemm_kernel, has_epilogue=has_epi, has_residual=has_res,
        has_shortcut=has_sc, center_start=center_start, cin=cin)

    res = pl.pallas_call(
        kernel,
        out_shape=tuple(out_shapes) if has_sc else out_shapes[0],
        grid=(mp // tm,),
        in_specs=in_specs,
        out_specs=tuple(out_specs) if has_sc else out_specs[0],
        compiler_params=pltpu.CompilerParams(
            dimension_semantics=("parallel",), vmem_limit_bytes=vmem_limit),
    )(*args)

    if has_sc:
        out2d, sc2d = res
    else:
        out2d, sc2d = res, None
    out4d = out2d[:m].reshape(n, ho, wo, cout_p)    # channels stay padded (lane-dense)
    return out4d, (sc2d[:m] if has_sc else None)


# ----------------------------------------------------------------------------
# BasicBlock (Pallas) + pure-JAX reference
# ----------------------------------------------------------------------------
class BasicBlockPallas:
    def __init__(self, in_planes, out_planes, stride, drop_rate=0.0, *,
                 key, compute_dtype=jnp.bfloat16):
        assert drop_rate == 0.0  # TODO(synk): training-mode dropout not implemented
        self.in_planes = in_planes
        self.out_planes = out_planes
        self.stride = stride
        self.equal_in_out = in_planes == out_planes
        self.compute_dtype = compute_dtype

        ks = jax.random.split(key, 8)

        def bn_params(k, c):
            k1, k2, k3, k4 = jax.random.split(k, 4)
            gamma = 1.0 + 0.1 * jax.random.normal(k1, (c,), jnp.float32)
            beta = 0.1 * jax.random.normal(k2, (c,), jnp.float32)
            mean = 0.1 * jax.random.normal(k3, (c,), jnp.float32)
            var = 1.0 + 0.1 * jnp.abs(jax.random.normal(k4, (c,), jnp.float32))
            return gamma, beta, mean, var

        self.bn1 = bn_params(ks[0], in_planes)
        self.bn2 = bn_params(ks[1], out_planes)
        # He-style init, HWIO layout.
        self.w1 = jax.random.normal(ks[2], (3, 3, in_planes, out_planes),
                                    jnp.float32) * (2.0 / (9 * in_planes)) ** 0.5
        self.w2 = jax.random.normal(ks[3], (3, 3, out_planes, out_planes),
                                    jnp.float32) * (2.0 / (9 * out_planes)) ** 0.5
        self.w_sc = None
        if not self.equal_in_out:
            self.w_sc = jax.random.normal(ks[4], (1, 1, in_planes, out_planes),
                                          jnp.float32) * (2.0 / in_planes) ** 0.5

    def __call__(self, x_nchw):
        cd = self.compute_dtype
        eps = 1e-5
        g2, b2, m2, v2 = self.bn2
        scale2 = g2 / jnp.sqrt(v2 + eps)
        bias2 = b2 - m2 * scale2
        cout = self.out_planes
        cout_p = _round_up(cout, 128)

        x = jnp.transpose(x_nchw, (0, 2, 3, 1))          # NCHW -> NHWC
        y = bn_relu(x, *self.bn1, out_dtype=cd)           # relu1(bn1(x))

        # conv1 with fused bn2+relu2 epilogue; convShortcut (1x1) fused as a
        # second output of the same kernel when in/out planes differ.
        h, sc = conv2d_gemm(
            y, self.w1, self.stride, cout_pad=cout_p,
            epi_scale=scale2, epi_bias=bias2,
            shortcut_w=None if self.equal_in_out else self.w_sc,
            compute_dtype=cd, out_dtype=cd)

        if self.equal_in_out:
            # Identity shortcut: channel-pad the original input once so the
            # residual stays lane-dense all the way to the final slice.
            n, hh, ww, c = x.shape
            residual = jnp.pad(x.reshape(n * hh * ww, c),
                               ((0, 0), (0, cout_p - c))).astype(cd)
        else:
            residual = sc                                  # (m, cout_p)

        # conv2 (stride 1) with fused residual add; its input keeps the padded
        # channel layout (w2's input-channel rows are zero-padded weight-side).
        out4d, _ = conv2d_gemm(h, self.w2, 1, cout_pad=cout_p,
                               residual_2d=residual,
                               compute_dtype=cd, out_dtype=jnp.float32)
        out = out4d[..., :cout]                            # drop channel padding once
        return jnp.transpose(out, (0, 3, 1, 2))            # NHWC -> NCHW


def _ref_bn_relu(x, p, eps=1e-5):
    gamma, beta, mean, var = p
    return jnp.maximum((x - mean) / jnp.sqrt(var + eps) * gamma + beta, 0.0)


def _ref_conv(x, w, stride, pad):
    return lax.conv_general_dilated(
        x, w, (stride, stride), ((pad, pad), (pad, pad)),
        dimension_numbers=("NHWC", "HWIO", "NHWC"))


def reference_block(block: BasicBlockPallas, x_nchw):
    x = jnp.transpose(x_nchw, (0, 2, 3, 1))
    if not block.equal_in_out:
        x = _ref_bn_relu(x, block.bn1)
        out = _ref_conv(x, block.w1, block.stride, 1)
        shortcut = _ref_conv(x, block.w_sc, block.stride, 0)
    else:
        out = _ref_bn_relu(x, block.bn1)
        out = _ref_conv(out, block.w1, block.stride, 1)
        shortcut = x
    out = _ref_bn_relu(out, block.bn2)
    out = _ref_conv(out, block.w2, 1, 1) + shortcut
    return jnp.transpose(out, (0, 3, 1, 2))


if __name__ == "__main__":
    key = jax.random.PRNGKey(0)
    k_x1, k_x2, k_b1, k_b2 = jax.random.split(key, 4)

    # Case 1: in_planes != out_planes, stride 2 (fused convShortcut path), f32.
    x1 = jax.random.normal(k_x1, (2, 4, 16, 16), jnp.float32)   # NCHW
    block1 = BasicBlockPallas(4, 8, stride=2, drop_rate=0.0, key=k_b1,
                              compute_dtype=jnp.float32)
    y1 = jax.block_until_ready(jax.jit(block1.__call__)(x1))
    r1 = reference_block(block1, x1)
    assert y1.shape == (2, 8, 8, 8), y1.shape
    assert jnp.allclose(y1, r1, atol=5e-4, rtol=5e-4), float(jnp.max(jnp.abs(y1 - r1)))

    # Case 2: in_planes == out_planes, stride 1 (identity shortcut path), f32.
    x2 = jax.random.normal(k_x2, (2, 8, 16, 16), jnp.float32)   # NCHW
    block2 = BasicBlockPallas(8, 8, stride=1, drop_rate=0.0, key=k_b2,
                              compute_dtype=jnp.float32)
    y2 = jax.block_until_ready(jax.jit(block2.__call__)(x2))
    r2 = reference_block(block2, x2)
    assert y2.shape == (2, 8, 16, 16), y2.shape
    assert jnp.allclose(y2, r2, atol=5e-4, rtol=5e-4), float(jnp.max(jnp.abs(y2 - r2)))

    # Case 3: default bf16 MXU operands / f32 accumulation (same params as case 1).
    block3 = BasicBlockPallas(4, 8, stride=2, drop_rate=0.0, key=k_b1)
    y3 = jax.block_until_ready(jax.jit(block3.__call__)(x1))
    assert y3.shape == (2, 8, 8, 8), y3.shape
    assert float(jnp.max(jnp.abs(y3 - r1))) < 0.5, float(jnp.max(jnp.abs(y3 - r1)))

    print("KERNEL_OK")
</pallas_src>

<mosaic_0001>
module attributes {stable_mosaic.version = 11 : i64} {
  func.func @_bn_relu_kernel(%arg0: i32, %arg1: memref<8x128xf32, #tpu.memory_space<vmem>>, %arg2: memref<1x128xf32, #tpu.memory_space<vmem>>, %arg3: memref<1x128xf32, #tpu.memory_space<vmem>>, %arg4: memref<8x128xf32, #tpu.memory_space<vmem>>) attributes {dimension_semantics = [#tpu.dimension_semantics<parallel>], iteration_bounds = array<i64: 2>, scalar_prefetch = 0 : i64, scratch_operands = 0 : i64, tpu.core_type = #tpu.core_type<tc>, window_params = [{transform_indices = @transform_0, window_bounds = array<i64: 8, 128>}, {pipeline_mode = #tpu.pipeline_mode<synchronous>, transform_indices = @transform_1, window_bounds = array<i64: 1, 128>}, {pipeline_mode = #tpu.pipeline_mode<synchronous>, transform_indices = @transform_2, window_bounds = array<i64: 1, 128>}, {transform_indices = @transform_3, window_bounds = array<i64: 8, 128>}]} {
    %c0 = arith.constant 0 : index
    %c0_0 = arith.constant 0 : index
    %0 = vector.load %arg1[%c0, %c0_0] : memref<8x128xf32, #tpu.memory_space<vmem>>, vector<8x128xf32>
    %c0_1 = arith.constant 0 : index
    %c0_2 = arith.constant 0 : index
    %1 = vector.load %arg2[%c0_1, %c0_2] : memref<1x128xf32, #tpu.memory_space<vmem>>, vector<1x128xf32>
    %2 = vector.broadcast %1 : vector<1x128xf32> to vector<8x128xf32>
    %3 = arith.mulf %0, %2 : vector<8x128xf32>
    %c0_3 = arith.constant 0 : index
    %c0_4 = arith.constant 0 : index
    %4 = vector.load %arg3[%c0_3, %c0_4] : memref<1x128xf32, #tpu.memory_space<vmem>>, vector<1x128xf32>
    %5 = vector.broadcast %4 : vector<1x128xf32> to vector<8x128xf32>
    %6 = arith.addf %3, %5 : vector<8x128xf32>
    %cst = arith.constant 0.000000e+00 : f32
    %7 = vector.broadcast %cst : f32 to vector<8x128xf32>
    %8 = arith.maximumf %6, %7 : vector<8x128xf32>
    %c0_5 = arith.constant 0 : index
    %c0_6 = arith.constant 0 : index
    %9 = vector.load %arg4[%c0_5, %c0_6] : memref<8x128xf32, #tpu.memory_space<vmem>>, vector<8x128xf32>
    tpu.vector_store %arg4[%c0_5, %c0_6], %8 {strides = array<i32>} : memref<8x128xf32, #tpu.memory_space<vmem>>, vector<8x128xf32>,
    return
  }
  func.func @transform_0(%arg0: i32) -> (i32, i32) {
    %c0_i32 = arith.constant 0 : i32
    %c0_i32_0 = arith.constant 0 : i32
    return %arg0, %c0_i32 : i32, i32
  }
  func.func @transform_1(%arg0: i32) -> (i32, i32) {
    %c0_i32 = arith.constant 0 : i32
    %c0_i32_0 = arith.constant 0 : i32
    %c0_i32_1 = arith.constant 0 : i32
    return %c0_i32, %c0_i32_0 : i32, i32
  }
  func.func @transform_2(%arg0: i32) -> (i32, i32) {
    %c0_i32 = arith.constant 0 : i32
    %c0_i32_0 = arith.constant 0 : i32
    %c0_i32_1 = arith.constant 0 : i32
    return %c0_i32, %c0_i32_0 : i32, i32
  }
  func.func @transform_3(%arg0: i32) -> (i32, i32) {
    %c0_i32 = arith.constant 0 : i32
    %c0_i32_0 = arith.constant 0 : i32
    return %arg0, %c0_i32 : i32, i32
  }
}

module attributes {stable_mosaic.version = 11 : i64} {
  func.func @_conv_gemm_kernel(%arg0: i32, %arg1: memref<64x36xf32, #tpu.memory_space<vmem>>, %arg2: memref<36x128xf32, #tpu.memory_space<vmem>>, %arg3: memref<1x128xf32, #tpu.memory_space<vmem>>, %arg4: memref<1x128xf32, #tpu.memory_space<vmem>>, %arg5: memref<4x128xf32, #tpu.memory_space<vmem>>, %arg6: memref<64x128xf32, #tpu.memory_space<vmem>>, %arg7: memref<64x128xf32, #tpu.memory_space<vmem>>) attributes {dimension_semantics = [#tpu.dimension_semantics<parallel>], iteration_bounds = array<i64: 2>, scalar_prefetch = 0 : i64, scratch_operands = 0 : i64, tpu.core_type = #tpu.core_type<tc>, window_params = [{transform_indices = @transform_0, window_bounds = array<i64: 64, 36>}, {pipeline_mode = #tpu.pipeline_mode<synchronous>, transform_indices = @transform_1, window_bounds = array<i64: 36, 128>}, {pipeline_mode = #tpu.pipeline_mode<synchronous>, transform_indices = @transform_2, window_bounds = array<i64: 1, 128>}, {pipeline_mode = #tpu.pipeline_mode<synchronous>, transform_indices = @transform_3, window_bounds = array<i64: 1, 128>}, {pipeline_mode = #tpu.pipeline_mode<synchronous>, transform_indices = @transform_4, window_bounds = array<i64: 4, 128>}, {transform_indices = @transform_5, window_bounds = array<i64: 64, 128>}, {transform_indices = @transform_6, window_bounds = array<i64: 64, 128>}]} {
    %c0 = arith.constant 0 : index
    %c0_0 = arith.constant 0 : index
    %0 = vector.load %arg1[%c0, %c0_0] : memref<64x36xf32, #tpu.memory_space<vmem>>, vector<64x36xf32>
    %c0_1 = arith.constant 0 : index
    %c0_2 = arith.constant 0 : index
    %1 = vector.load %arg2[%c0_1, %c0_2] : memref<36x128xf32, #tpu.memory_space<vmem>>, vector<36x128xf32>
    %cst = arith.constant dense<0.000000e+00> : vector<64x128xf32>
    %2 = tpu.matmul %0, %1, %cst {dimension_numbers = #tpu.dot_dimension_numbers<[1], [0], [0], [1], [0, 0, 1, 1], [], []>} : vector<64x36xf32>, vector<36x128xf32>, vector<64x128xf32> -> vector<64x128xf32>
    %c0_3 = arith.constant 0 : index
    %c0_4 = arith.constant 0 : index
    %3 = vector.load %arg3[%c0_3, %c0_4] : memref<1x128xf32, #tpu.memory_space<vmem>>, vector<1x128xf32>
    %4 = vector.broadcast %3 : vector<1x128xf32> to vector<64x128xf32>
    %5 = arith.mulf %2, %4 : vector<64x128xf32>
    %c0_5 = arith.constant 0 : index
    %c0_6 = arith.constant 0 : index
    %6 = vector.load %arg4[%c0_5, %c0_6] : memref<1x128xf32, #tpu.memory_space<vmem>>, vector<1x128xf32>
    %7 = vector.broadcast %6 : vector<1x128xf32> to vector<64x128xf32>
    %8 = arith.addf %5, %7 : vector<64x128xf32>
    %cst_7 = arith.constant 0.000000e+00 : f32
    %9 = vector.broadcast %cst_7 : f32 to vector<64x128xf32>
    %10 = arith.maximumf %8, %9 : vector<64x128xf32>
    %c0_8 = arith.constant 0 : index
    %c0_9 = arith.constant 0 : index
    %11 = vector.load %arg6[%c0_8, %c0_9] : memref<64x128xf32, #tpu.memory_space<vmem>>, vector<64x128xf32>
    tpu.vector_store %arg6[%c0_8, %c0_9], %10 {strides = array<i32>} : memref<64x128xf32, #tpu.memory_space<vmem>>, vector<64x128xf32>,
    %c0_10 = arith.constant 0 : index
    %c16 = arith.constant 16 : index
    %12 = vector.load %arg1[%c0_10, %c16] : memref<64x36xf32, #tpu.memory_space<vmem>>, vector<64x4xf32>
    %c0_11 = arith.constant 0 : index
    %c0_12 = arith.constant 0 : index
    %13 = vector.load %arg5[%c0_11, %c0_12] : memref<4x128xf32, #tpu.memory_space<vmem>>, vector<4x128xf32>
    %cst_13 = arith.constant dense<0.000000e+00> : vector<64x128xf32>
    %14 = tpu.matmul %12, %13, %cst_13 {dimension_numbers = #tpu.dot_dimension_numbers<[1], [0], [0], [1], [0, 0, 1, 1], [], []>} : vector<64x4xf32>, vector<4x128xf32>, vector<64x128xf32> -> vector<64x128xf32>
    %c0_14 = arith.constant 0 : index
    %c0_15 = arith.constant 0 : index
    %15 = vector.load %arg7[%c0_14, %c0_15] : memref<64x128xf32, #tpu.memory_space<vmem>>, vector<64x128xf32>
    tpu.vector_store %arg7[%c0_14, %c0_15], %14 {strides = array<i32>} : memref<64x128xf32, #tpu.memory_space<vmem>>, vector<64x128xf32>,
    return
  }
  func.func @transform_0(%arg0: i32) -> (i32, i32) {
    %c0_i32 = arith.constant 0 : i32
    %c0_i32_0 = arith.constant 0 : i32
    return %arg0, %c0_i32 : i32, i32
  }
  func.func @transform_1(%arg0: i32) -> (i32, i32) {
    %c0_i32 = arith.constant 0 : i32
    %c0_i32_0 = arith.constant 0 : i32
    %c0_i32_1 = arith.constant 0 : i32
    return %c0_i32, %c0_i32_0 : i32, i32
  }
  func.func @transform_2(%arg0: i32) -> (i32, i32) {
    %c0_i32 = arith.constant 0 : i32
    %c0_i32_0 = arith.constant 0 : i32
    %c0_i32_1 = arith.constant 0 : i32
    return %c0_i32, %c0_i32_0 : i32, i32
  }
  func.func @transform_3(%arg0: i32) -> (i32, i32) {
    %c0_i32 = arith.constant 0 : i32
    %c0_i32_0 = arith.constant 0 : i32
    %c0_i32_1 = arith.constant 0 : i32
    return %c0_i32, %c0_i32_0 : i32, i32
  }
  func.func @transform_4(%arg0: i32) -> (i32, i32) {
    %c0_i32 = arith.constant 0 : i32
    %c0_i32_0 = arith.constant 0 : i32
    %c0_i32_1 = arith.constant 0 : i32
    return %c0_i32, %c0_i32_0 : i32, i32
  }
  func.func @transform_5(%arg0: i32) -> (i32, i32) {
    %c0_i32 = arith.constant 0 : i32
    %c0_i32_0 = arith.constant 0 : i32
    return %arg0, %c0_i32 : i32, i32
  }
  func.func @transform_6(%arg0: i32) -> (i32, i32) {
    %c0_i32 = arith.constant 0 : i32
    %c0_i32_0 = arith.constant 0 : i32
    return %arg0, %c0_i32 : i32, i32
  }
}

module attributes {stable_mosaic.version = 11 : i64} {
  func.func @_conv_gemm_kernel(%arg0: i32, %arg1: memref<64x1152xf32, #tpu.memory_space<vmem>>, %arg2: memref<1152x128xf32, #tpu.memory_space<vmem>>, %arg3: memref<64x128xf32, #tpu.memory_space<vmem>>, %arg4: memref<64x128xf32, #tpu.memory_space<vmem>>) attributes {dimension_semantics = [#tpu.dimension_semantics<parallel>], iteration_bounds = array<i64: 2>, scalar_prefetch = 0 : i64, scratch_operands = 0 : i64, tpu.core_type = #tpu.core_type<tc>, window_params = [{transform_indices = @transform_0, window_bounds = array<i64: 64, 1152>}, {pipeline_mode = #tpu.pipeline_mode<synchronous>, transform_indices = @transform_1, window_bounds = array<i64: 1152, 128>}, {transform_indices = @transform_2, window_bounds = array<i64: 64, 128>}, {transform_indices = @transform_3, window_bounds = array<i64: 64, 128>}]} {
    %c0 = arith.constant 0 : index
    %c0_0 = arith.constant 0 : index
    %0 = vector.load %arg1[%c0, %c0_0] : memref<64x1152xf32, #tpu.memory_space<vmem>>, vector<64x1152xf32>
    %c0_1 = arith.constant 0 : index
    %c0_2 = arith.constant 0 : index
    %1 = vector.load %arg2[%c0_1, %c0_2] : memref<1152x128xf32, #tpu.memory_space<vmem>>, vector<1152x128xf32>
    %cst = arith.constant dense<0.000000e+00> : vector<64x128xf32>
    %2 = tpu.matmul %0, %1, %cst {dimension_numbers = #tpu.dot_dimension_numbers<[1], [0], [0], [1], [0, 0, 1, 1], [], []>} : vector<64x1152xf32>, vector<1152x128xf32>, vector<64x128xf32> -> vector<64x128xf32>
    %c0_3 = arith.constant 0 : index
    %c0_4 = arith.constant 0 : index
    %3 = vector.load %arg3[%c0_3, %c0_4] : memref<64x128xf32, #tpu.memory_space<vmem>>, vector<64x128xf32>
    %4 = arith.addf %2, %3 : vector<64x128xf32>
    %c0_5 = arith.constant 0 : index
    %c0_6 = arith.constant 0 : index
    %5 = vector.load %arg4[%c0_5, %c0_6] : memref<64x128xf32, #tpu.memory_space<vmem>>, vector<64x128xf32>
    tpu.vector_store %arg4[%c0_5, %c0_6], %4 {strides = array<i32>} : memref<64x128xf32, #tpu.memory_space<vmem>>, vector<64x128xf32>,
    return
  }
  func.func @transform_0(%arg0: i32) -> (i32, i32) {
    %c0_i32 = arith.constant 0 : i32
    %c0_i32_0 = arith.constant 0 : i32
    return %arg0, %c0_i32 : i32, i32
  }
  func.func @transform_1(%arg0: i32) -> (i32, i32) {
    %c0_i32 = arith.constant 0 : i32
    %c0_i32_0 = arith.constant 0 : i32
    %c0_i32_1 = arith.constant 0 : i32
    return %c0_i32, %c0_i32_0 : i32, i32
  }
  func.func @transform_2(%arg0: i32) -> (i32, i32) {
    %c0_i32 = arith.constant 0 : i32
    %c0_i32_0 = arith.constant 0 : i32
    return %arg0, %c0_i32 : i32, i32
  }
  func.func @transform_3(%arg0: i32) -> (i32, i32) {
    %c0_i32 = arith.constant 0 : i32
    %c0_i32_0 = arith.constant 0 : i32
    return %arg0, %c0_i32 : i32, i32
  }
}

</mosaic_0001>

<llo_original>
// kernel: tile.11
$region0: #{tile.11}
  %s0 = inlined_call_operand.vmem [shape: f32[32,4], index: 0, kind: input, shape index: {}]
  %s1 = inlined_call_operand.vmem [shape: f32[1,128], index: 1, kind: output, shape index: {}]
  $region1: #{tile.11} parent=0
    #allocation0 [shape = 'u8[4096]{0}', space=vmem, size = 0x1000, scoped, tag = 'scoped mem for output reshape']
    %v2 = vld [vmem:[%s0] sm:$0x1]
    %vm3 = vcmask 31744
    %4 = vst.msk [vmem:[#allocation0] sm:$0x1] %vm3, %v2
    %s5 = scalar_lea.vmem %s0, 31
    %v6 = vld [vmem:[%s5] sm:$0x1]
    %7 = vrot.lane.b32.xlu0 %v6, 124
    %v8 = vpop.permute.xlu0 %7
    %vm9 = vcmask 1048544
    %10 = vst.msk [vmem:[#allocation0] sm:$0x1] %vm9, %v8
    %s11 = scalar_lea.vmem %s0, 30
    %v12 = vld [vmem:[%s11] sm:$0x1]
    %13 = vrot.lane.b32.xlu0 %v12, 120
    %v14 = vpop.permute.xlu0 %13
    %vm15 = vcmask 1015744
    %16 = vst.msk [vmem:[#allocation0] sm:$0x1] %vm15, %v14
    %s17 = scalar_lea.vmem %s0, 29
    %v18 = vld [vmem:[%s17] sm:$0x1]
    %19 = vrot.lane.b32.xlu0 %v18, 116
    %v20 = vpop.permute.xlu0 %19
    %vm21 = vcmask 982944
    %22 = vst.msk [vmem:[#allocation0] sm:$0x1] %vm21, %v20
    %s23 = scalar_lea.vmem %s0, 28
    %v24 = vld [vmem:[%s23] sm:$0x1]
    %25 = vrot.lane.b32.xlu0 %v24, 112
    %v26 = vpop.permute.xlu0 %25
    %vm27 = vcmask 950144
    %28 = vst.msk [vmem:[#allocation0] sm:$0x1] %vm27, %v26
    %s29 = scalar_lea.vmem %s0, 27
    %v30 = vld [vmem:[%s29] sm:$0x1]
    %31 = vrot.lane.b32.xlu0 %v30, 108
    %v32 = vpop.permute.xlu0 %31
    %vm33 = vcmask 917344
    %34 = vst.msk [vmem:[#allocation0] sm:$0x1] %vm33, %v32
    %s35 = scalar_lea.vmem %s0, 26
    %v36 = vld [vmem:[%s35] sm:$0x1]
    %37 = vrot.lane.b32.xlu0 %v36, 104
    %v38 = vpop.permute.xlu0 %37
    %vm39 = vcmask 884544
    %40 = vst.msk [vmem:[#allocation0] sm:$0x1] %vm39, %v38
    %s41 = scalar_lea.vmem %s0, 25
    %v42 = vld [vmem:[%s41] sm:$0x1]
    %43 = vrot.lane.b32.xlu0 %v42, 100
    %v44 = vpop.permute.xlu0 %43
    %vm45 = vcmask 851744
    %46 = vst.msk [vmem:[#allocation0] sm:$0x1] %vm45, %v44
    %s47 = scalar_lea.vmem %s0, 24
    %v48 = vld [vmem:[%s47] sm:$0x1]
    %49 = vrot.lane.b32.xlu0 %v48, 96
    %v50 = vpop.permute.xlu0 %49
    %vm51 = vcmask 818944
    %52 = vst.msk [vmem:[#allocation0] sm:$0x1] %vm51, %v50
    %s53 = scalar_lea.vmem %s0, 23
    %v54 = vld [vmem:[%s53] sm:$0x1]
    %55 = vrot.lane.b32.xlu0 %v54, 92
    %v56 = vpop.permute.xlu0 %55
    %vm57 = vcmask 786144
    %58 = vst.msk [vmem:[#allocation0] sm:$0x1] %vm57, %v56
    %s59 = scalar_lea.vmem %s0, 22
    %v60 = vld [vmem:[%s59] sm:$0x1]
    %61 = vrot.lane.b32.xlu0 %v60, 88
    %v62 = vpop.permute.xlu0 %61
    %vm63 = vcmask 753344
    %64 = vst.msk [vmem:[#allocation0] sm:$0x1] %vm63, %v62
    %s65 = scalar_lea.vmem %s0, 21
    %v66 = vld [vmem:[%s65] sm:$0x1]
    %67 = vrot.lane.b32.xlu0 %v66, 84
    %v68 = vpop.permute.xlu0 %67
    %vm69 = vcmask 720544
    %70 = vst.msk [vmem:[#allocation0] sm:$0x1] %vm69, %v68
    %s71 = scalar_lea.vmem %s0, 20
    %v72 = vld [vmem:[%s71] sm:$0x1]
    %73 = vrot.lane.b32.xlu0 %v72, 80
    %v74 = vpop.permute.xlu0 %73
    %vm75 = vcmask 687744
    %76 = vst.msk [vmem:[#allocation0] sm:$0x1] %vm75, %v74
    %s77 = scalar_lea.vmem %s0, 19
    %v78 = vld [vmem:[%s77] sm:$0x1]
    %79 = vrot.lane.b32.xlu0 %v78, 76
    %v80 = vpop.permute.xlu0 %79
    %vm81 = vcmask 654944
    %82 = vst.msk [vmem:[#allocation0] sm:$0x1] %vm81, %v80
    %s83 = scalar_lea.vmem %s0, 18
    %v84 = vld [vmem:[%s83] sm:$0x1]
    %85 = vrot.lane.b32.xlu0 %v84, 72
    %v86 = vpop.permute.xlu0 %85
    %vm87 = vcmask 622144
    %88 = vst.msk [vmem:[#allocation0] sm:$0x1] %vm87, %v86
    %s89 = scalar_lea.vmem %s0, 17
    %v90 = vld [vmem:[%s89] sm:$0x1]
    %91 = vrot.lane.b32.xlu0 %v90, 68
    %v92 = vpop.permute.xlu0 %91
    %vm93 = vcmask 589344
    %94 = vst.msk [vmem:[#allocation0] sm:$0x1] %vm93, %v92
    %s95 = scalar_lea.vmem %s0, 16
    %v96 = vld [vmem:[%s95] sm:$0x1]
    %97 = vrot.lane.b32.xlu0 %v96, 64
    %v98 = vpop.permute.xlu0 %97
    %vm99 = vcmask 556544
    %100 = vst.msk [vmem:[#allocation0] sm:$0x1] %vm99, %v98
    %s101 = scalar_lea.vmem %s0, 15
    %v102 = vld [vmem:[%s101] sm:$0x1]
    %103 = vrot.lane.b32.xlu0 %v102, 60
    %v104 = vpop.permute.xlu0 %103
    %vm105 = vcmask 523744
    %106 = vst.msk [vmem:[#allocation0] sm:$0x1] %vm105, %v104
    %s107 = scalar_lea.vmem %s0, 14
    %v108 = vld [vmem:[%s107] sm:$0x1]
    %109 = vrot.lane.b32.xlu0 %v108, 56
    %v110 = vpop.permute.xlu0 %109
    %vm111 = vcmask 490944
    %112 = vst.msk [vmem:[#allocation0] sm:$0x1] %vm111, %v110
    %s113 = scalar_lea.vmem %s0, 13
    %v114 = vld [vmem:[%s113] sm:$0x1]
    %115 = vrot.lane.b32.xlu0 %v114, 52
    %v116 = vpop.permute.xlu0 %115
    %vm117 = vcmask 458144
    %118 = vst.msk [vmem:[#allocation0] sm:$0x1] %vm117, %v116
    %s119 = scalar_lea.vmem %s0, 12
    %v120 = vld [vmem:[%s119] sm:$0x1]
    %121 = vrot.lane.b32.xlu0 %v120, 48
    %v122 = vpop.permute.xlu0 %121
    %vm123 = vcmask 425344
    %124 = vst.msk [vmem:[#allocation0] sm:$0x1] %vm123, %v122
    %s125 = scalar_lea.vmem %s0, 11
    %v126 = vld [vmem:[%s125] sm:$0x1]
    %127 = vrot.lane.b32.xlu0 %v126, 44
    %v128 = vpop.permute.xlu0 %127
    %vm129 = vcmask 392544
    %130 = vst.msk [vmem:[#allocation0] sm:$0x1] %vm129, %v128
    %s131 = scalar_lea.vmem %s0, 10
    %v132 = vld [vmem:[%s131] sm:$0x1]
    %133 = vrot.lane.b32.xlu0 %v132, 40
    %v134 = vpop.permute.xlu0 %133
    %vm135 = vcmask 359744
    %136 = vst.msk [vmem:[#allocation0] sm:$0x1] %vm135, %v134
    %s137 = scalar_lea.vmem %s0, 9
    %v138 = vld [vmem:[%s137] sm:$0x1]
    %139 = vrot.lane.b32.xlu0 %v138, 36
    %v140 = vpop.permute.xlu0 %139
    %vm141 = vcmask 326944
    %142 = vst.msk [vmem:[#allocation0] sm:$0x1] %vm141, %v140
    %s143 = scalar_lea.vmem %s0, 8
    %v144 = vld [vmem:[%s143] sm:$0x1]
    %145 = vrot.lane.b32.xlu0 %v144, 32
    %v146 = vpop.permute.xlu0 %145
    %vm147 = vcmask 294144
    %148 = vst.msk [vmem:[#allocation0] sm:$0x1] %vm147, %v146
    %s149 = scalar_lea.vmem %s0, 7
    %v150 = vld [vmem:[%s149] sm:$0x1]
    %151 = vrot.lane.b32.xlu0 %v150, 28
    %v152 = vpop.permute.xlu0 %151
    %vm153 = vcmask 261344
    %154 = vst.msk [vmem:[#allocation0] sm:$0x1] %vm153, %v152
    %s155 = scalar_lea.vmem %s0, 6
    %v156 = vld [vmem:[%s155] sm:$0x1]
    %157 = vrot.lane.b32.xlu0 %v156, 24
    %v158 = vpop.permute.xlu0 %157
    %vm159 = vcmask 228544
    %160 = vst.msk [vmem:[#allocation0] sm:$0x1] %vm159, %v158
    %s161 = scalar_lea.vmem %s0, 5
    %v162 = vld [vmem:[%s161] sm:$0x1]
    %163 = vrot.lane.b32.xlu0 %v162, 20
    %v164 = vpop.permute.xlu0 %163
    %vm165 = vcmask 195744
    %166 = vst.msk [vmem:[#allocation0] sm:$0x1] %vm165, %v164
    %s167 = scalar_lea.vmem %s0, 4
    %v168 = vld [vmem:[%s167] sm:$0x1]
    %169 = vrot.lane.b32.xlu0 %v168, 16
    %v170 = vpop.permute.xlu0 %169
    %vm171 = vcmask 162944
    %172 = vst.msk [vmem:[#allocation0] sm:$0x1] %vm171, %v170
    %s173 = scalar_lea.vmem %s0, 3
    %v174 = vld [vmem:[%s173] sm:$0x1]
    %175 = vrot.lane.b32.xlu0 %v174, 12
    %v176 = vpop.permute.xlu0 %175
    %vm177 = vcmask 130144
    %178 = vst.msk [vmem:[#allocation0] sm:$0x1] %vm177, %v176
    %s179 = scalar_lea.vmem %s0, 2
    %v180 = vld [vmem:[%s179] sm:$0x1]
    %181 = vrot.lane.b32.xlu0 %v180, 8
    %v182 = vpop.permute.xlu0 %181
    %vm183 = vcmask 97344
    %184 = vst.msk [vmem:[#allocation0] sm:$0x1] %vm183, %v182
    %s185 = scalar_lea.vmem %s0, 1
    %v186 = vld [vmem:[%s185] sm:$0x1]
    %187 = vrot.lane.b32.xlu0 %v186, 4
    %v188 = vpop.permute.xlu0 %187
    %vm189 = vcmask 64544
    %190 = vst.msk [vmem:[#allocation0] sm:$0x1] %vm189, %v188
    %s192 = sshll.u32 1, 1
    %s193 = ssub.s32 %s192, 1
    %v195 = vld [vmem:[#allocation0] sm:%s193]
    %s196 = sshll.u32 1, 1
    %s197 = ssub.s32 %s196, 1
    %198 = vst [vmem:[%s1] sm:%s197] %v195

// kernel: tile.10
$region0: #{tile.10}
  #allocation0 [shape = 's32[1]{0}', space=sflag, size = 0x4, scoped, tag = 'scoped memory for tile.10']
  %s0 = inlined_call_operand.vmem [shape: f32[4], index: 0, kind: input, shape index: {}]
  %s1 = inlined_call_operand.vmem [shape: f32[32,4], index: 1, kind: output, shape index: {}]
  // Predicated region
  $region2: #{tile.10} parent=0 // pred_check
    _
  $region3: #{tile.10} parent=0 // pred_check_branch
    %3 = sbr.rel (0) target = $region5
  $region4: #{tile.10} parent=0 // pred_region
    _
  $region5: #{tile.10} parent=0 // pred_fallthru
    _
  %v4 = vld [vmem:[%s0] ss:$0 sm:$0xff]
  %5 = vst [vmem:[%s1] sm:$0xff] %v4
  %s6 = scalar_lea.vmem %s1, 8
  %7 = vst [vmem:[%s6] sm:$0xff] %v4
  %s8 = scalar_lea.vmem %s1, 16
  %9 = vst [vmem:[%s8] sm:$0xff] %v4
  %s10 = scalar_lea.vmem %s1, 24
  %11 = vst [vmem:[%s10] sm:$0xff] %v4

// kernel: a_call__.3
$region0: #{a_call__.3}
  #allocation0 [shape = 'u32[]', space=smem, size = 0x4, offset = 0x4, fixed_abs, tag = 'smem constant byte address 0x4 - core index']
  #allocation1 [shape = 'u32[144,128]{1,0:T(1,128)}', space=vmem, size = 0x12000, scoped, tag = 'internal scratch']
  %s0 = inlined_call_operand.vmem [shape: f32[16,128], index: 0, kind: input, shape index: {}]
  %s1 = inlined_call_operand.vmem [shape: f32[1,128], index: 1, kind: input, shape index: {}]
  %s2 = inlined_call_operand.vmem [shape: f32[1,128], index: 2, kind: input, shape index: {}]
  %s3 = inlined_call_operand.vmem [shape: f32[16,128], index: 3, kind: output, shape index: {}]
  %s4 = sld [smem:[#allocation0]]
  $region45: #{a_call__.3} parent=0
    _
  %s6 = ssub.s32 1, %s4
  %s7 = scalar_select 0, %s6, %s4
  loop: start=0, step=1, limit=4
  $region2: #{a_call__.3} parent=0 // loop_pre_header
    _
  $region3: #{a_call__.3} parent=0 // loop_header
    %s9 = sphi 0, %s13
    %p10 = scmp.ge.s32.totalorder %s9, 4
    %s19 = sphi 0, %s21
    %s22 = sphi 0, %s19
    %s23 = sphi 0, %s22
    %s39 = sphi 0, %s23
    %s43 = sphi 0, %s43
    %s45 = sphi 0, %s43
    %s46 = sphi 0, %s45
    %s60 = sphi 0, %s46
    %s64 = sphi 0, %s64
    %s66 = sphi 0, %s64
    %s67 = sphi 0, %s66
    %s81 = sphi 0, %s67
    %s87 = sphi 0, %s89
    %s90 = sphi 0, %s87
    %s91 = sphi 0, %s90
    %s107 = sphi 0, %s91
  $region4: #{a_call__.3} parent=0 // loop_header_branch
    %12 = sbr.rel (%p10) target = $region8
  $region5: #{a_call__.3} parent=0 // loop_body
    %s14 = ssub.s32 %s9, 1
    %s15 = ssub.s32 %s9, 2
    %s16 = sadd.s32 %s9, 1
    %s17 = ssub.s32 %s9, %s16
    %p18 = scmp.eq.s32.totalorder %s17, 0
    %s20 = sadd.s32 %s19, 1
    %s21 = scalar_select %p18, %s19, %s20
    %p24 = pneg %p18
    %p25 = scmp.eq.s32.totalorder %s9, 1
    %p26 = por %p24, %p25
    %p27 = scmp.ne.s32.totalorder %s19, %s22
    %p28 = scmp.eq.s32.totalorder %s9, 0
    %p29 = por %p27, %p28
    %p30 = scmp.ne.s32.totalorder %s19, %s22
    %p31 = scmp.eq.s32.totalorder %s14, 1
    %p32 = por %p30, %p31
    %p33 = scmp.ne.s32.totalorder %s22, %s23
    %p34 = scmp.eq.s32.totalorder %s14, 0
    %p35 = por %p33, %p34
    %p36 = scmp.ne.s32.totalorder %s22, %s23
    %p37 = scmp.eq.s32.totalorder %s15, 1
    %p38 = por %p36, %p37
    %p40 = scmp.ne.s32.totalorder %s23, %s39
    %p41 = scmp.eq.s32.totalorder %s15, 0
    %p42 = por %p40, %p41
    %s44 = sadd.s32 %s43, 1
    %p47 = scmp.eq.s32.totalorder %s9, 1
    %p48 = scmp.ne.s32.totalorder %s43, %s45
    %p49 = scmp.eq.s32.totalorder %s9, 0
    %p50 = por %p48, %p49
    %p51 = scmp.ne.s32.totalorder %s43, %s45
    %p52 = scmp.eq.s32.totalorder %s14, 1
    %p53 = por %p51, %p52
    %p54 = scmp.ne.s32.totalorder %s45, %s46
    %p55 = scmp.eq.s32.totalorder %s14, 0
    %p56 = por %p54, %p55
    %p57 = scmp.ne.s32.totalorder %s45, %s46
    %p58 = scmp.eq.s32.totalorder %s15, 1
    %p59 = por %p57, %p58
    %p61 = scmp.ne.s32.totalorder %s46, %s60
    %p62 = scmp.eq.s32.totalorder %s15, 0
    %p63 = por %p61, %p62
    %s65 = sadd.s32 %s64, 1
    %p68 = scmp.eq.s32.totalorder %s9, 1
    %p69 = scmp.ne.s32.totalorder %s64, %s66
    %p70 = scmp.eq.s32.totalorder %s9, 0
    %p71 = por %p69, %p70
    %p72 = scmp.ne.s32.totalorder %s64, %s66
    %p73 = scmp.eq.s32.totalorder %s14, 1
    %p74 = por %p72, %p73
    %p75 = scmp.ne.s32.totalorder %s66, %s67
    %p76 = scmp.eq.s32.totalorder %s14, 0
    %p77 = por %p75, %p76
    %p78 = scmp.ne.s32.totalorder %s66, %s67
    %p79 = scmp.eq.s32.totalorder %s15, 1
    %p80 = por %p78, %p79
    %p82 = scmp.ne.s32.totalorder %s67, %s81
    %p83 = scmp.eq.s32.totalorder %s15, 0
    %p84 = por %p82, %p83
    %s85 = ssub.s32 %s9, %s16
    %p86 = scmp.eq.s32.totalorder %s85, 0
    %s88 = sadd.s32 %s87, 1
    %s89 = scalar_select %p86, %s87, %s88
    %p92 = pneg %p86
    %p93 = scmp.eq.s32.totalorder %s9, 1
    %p94 = por %p92, %p93
    %p95 = scmp.ne.s32.totalorder %s87, %s90
    %p96 = scmp.eq.s32.totalorder %s9, 0
    %p97 = por %p95, %p96
    %p98 = scmp.ne.s32.totalorder %s87, %s90
    %p99 = scmp.eq.s32.totalorder %s14, 1
    %p100 = por %p98, %p99
    %p101 = scmp.ne.s32.totalorder %s90, %s91
    %p102 = scmp.eq.s32.totalorder %s14, 0
    %p103 = por %p101, %p102
    %p104 = scmp.ne.s32.totalorder %s90, %s91
    %p105 = scmp.eq.s32.totalorder %s15, 1
    %p106 = por %p104, %p105
    %p108 = scmp.ne.s32.totalorder %s91, %s107
    %p109 = scmp.eq.s32.totalorder %s15, 0
    %p110 = por %p108, %p109
    %p111 = scmp.le.s32.totalorder 1, %s9
    %p112 = scmp.lt.s32.totalorder %s9, 3
    %p113 = pnand %p111, %p112
    %p114 = pneg %p113
    // Predicated region
    $region9: #{a_call__.3} parent=5 // pred_check
      _
    $region10: #{a_call__.3} parent=5 // pred_check_branch
      %116 = sbr.rel (%p113) target = $region12
    $region11: #{a_call__.3} parent=5 // pred_region
      %s117 = ssub.s32 %s9, 1
      // Predicated region
      $region13: #{a_call__.3} parent=11 // pred_check
        %p118 = pneg %p56
      $region14: #{a_call__.3} parent=11 // pred_check_branch
        %120 = sbr.rel (%p118) target = $region16
      $region15: #{a_call__.3} parent=11 // pred_region
        _
      $region16: #{a_call__.3} parent=11 // pred_fallthru
        _
      // Predicated region
      $region17: #{a_call__.3} parent=11 // pred_check
        %p121 = pneg %p77
      $region18: #{a_call__.3} parent=11 // pred_check_branch
        %123 = sbr.rel (%p121) target = $region20
      $region19: #{a_call__.3} parent=11 // pred_region
        _
      $region20: #{a_call__.3} parent=11 // pred_fallthru
        _
    $region12: #{a_call__.3} parent=5 // pred_fallthru
      _
    %p124 = scmp.lt.s32.totalorder %s9, 2
    // Predicated region
    $region21: #{a_call__.3} parent=5 // pred_check
      %p125 = pneg %p124
    $region22: #{a_call__.3} parent=5 // pred_check_branch
      %127 = sbr.rel (%p125) target = $region24
    $region23: #{a_call__.3} parent=5 // pred_region
      // Predicated region
      $region25: #{a_call__.3} parent=23 // pred_check
        %p128 = pneg %p29
      $region26: #{a_call__.3} parent=23 // pred_check_branch
        %130 = sbr.rel (%p128) target = $region28
      $region27: #{a_call__.3} parent=23 // pred_region
        %p131 = scmp.lt.s32.totalorder %s9, 1
        %s132 = scalar_select %p131, %s9, 1
        %s133 = smul.addr %s132, 8
        %s134 = scalar_lea.vmem %s0, %s133
      $region28: #{a_call__.3} parent=23 // pred_fallthru
        _
    $region24: #{a_call__.3} parent=5 // pred_fallthru
      _
    %p135 = scmp.le.s32.totalorder 1, %s9
    %p136 = scmp.lt.s32.totalorder %s9, 3
    %p137 = pnand %p135, %p136
    %p138 = pneg %p137
    // Predicated region
    $region29: #{a_call__.3} parent=5 // pred_check
      _
    $region30: #{a_call__.3} parent=5 // pred_check_branch
      %140 = sbr.rel (%p137) target = $region32
    $region31: #{a_call__.3} parent=5 // pred_region
      %s141 = ssub.s32 %s9, 1
      %p142 = scmp.lt.s32.totalorder %s14, 1
      %s143 = scalar_select %p142, %s14, 1
      %s144 = smul.addr %s143, 8
      %s145 = scalar_lea.vmem %s0, %s144
      %p146 = pneg %p35
      %p147 = pneg %p32
      %p148 = pneg %p56
      %p149 = pneg %p53
      %p150 = pneg %p77
      %p151 = pneg %p74
      %p152 = pneg %p103
      %p153 = pneg %p100
      %p154 = scmp.lt.s32.totalorder %s14, 1
      %s155 = scalar_select %p154, %s14, 1
      %s156 = smul.addr %s155, 8
      %s157 = scalar_lea.vmem %s3, %s156
      %p158 = scmp.lt.s32.totalorder %s14, 1
      %s159 = scalar_select %p158, %s14, 1
      %s160 = smul.addr %s159, 8
      %s161 = scalar_lea.vmem %s0, %s160
      %p162 = scmp.lt.s32.totalorder %s14, 1
      %s163 = scalar_select %p162, %s14, 1
      %s164 = smul.addr %s163, 8
      %s165 = scalar_lea.vmem %s3, %s164
      %v166 = vld [vmem:[%s161] sm:$0xff]
      %v167 = vld [vmem:[%s1] sm:$0x1]
      %v169 = vlaneseq
      %v170 = vshrl.u32 %v169, 7
      %v171 = vsub.s32 0, %v170
      %v172 = vrot.slane %v167, %v171
      %v174 = vmul.f32 %v166, %v172
      %v175 = vld [vmem:[%s2] sm:$0x1]
      %v177 = vlaneseq
      %v178 = vshrl.u32 %v177, 7
      %v179 = vsub.s32 0, %v178
      %v180 = vrot.slane %v175, %v179
      %v182 = vadd.f32 %v174, %v180
      %v183 = vmax.f32 %v182, 0.0
      %184 = vst [vmem:[%s165] sm:$0xff] %v183
      %p185 = scmp.lt.s32.totalorder %s14, 1
      %s186 = scalar_select %p185, %s14, 1
      %s187 = smul.addr %s186, 8
      %s188 = scalar_lea.vmem %s3, %s187
      // Predicated region
      $region33: #{a_call__.3} parent=31 // pred_check
        %p189 = pneg %p100
      $region34: #{a_call__.3} parent=31 // pred_check_branch
        %191 = sbr.rel (%p189) target = $region36
      $region35: #{a_call__.3} parent=31 // pred_region
        _
      $region36: #{a_call__.3} parent=31 // pred_fallthru
        _
    $region32: #{a_call__.3} parent=5 // pred_fallthru
      _
    %p192 = scmp.le.s32.totalorder 2, %s9
    // Predicated region
    $region37: #{a_call__.3} parent=5 // pred_check
      %p193 = pneg %p192
    $region38: #{a_call__.3} parent=5 // pred_check_branch
      %195 = sbr.rel (%p193) target = $region40
    $region39: #{a_call__.3} parent=5 // pred_region
      %s196 = ssub.s32 %s9, 2
      // Predicated region
      $region41: #{a_call__.3} parent=39 // pred_check
        %p197 = pneg %p106
      $region42: #{a_call__.3} parent=39 // pred_check_branch
        %199 = sbr.rel (%p197) target = $region44
      $region43: #{a_call__.3} parent=39 // pred_region
        %p200 = scmp.lt.s32.totalorder %s15, 1
        %s201 = scalar_select %p200, %s15, 1
        %s202 = smul.addr %s201, 8
        %s203 = scalar_lea.vmem %s3, %s202
      $region44: #{a_call__.3} parent=39 // pred_fallthru
        _
    $region40: #{a_call__.3} parent=5 // pred_fallthru
      _
  $region6: #{a_call__.3} parent=0 // loop_footer
    %s13 = sadd.s32 1, %s9
  $region7: #{a_call__.3} parent=0 // loop_footer_branch
    %8 = sbr.rel target = $region3
  $region8: #{a_call__.3} parent=0 // loop_exit
    _

// kernel: a_call__.4
$region0: #{a_call__.4}
  #allocation0 [shape = 'u32[]', space=smem, size = 0x4, offset = 0x4, fixed_abs, tag = 'smem constant byte address 0x4 - core index']
  #allocation1 [shape = 'u32[144,128]{1,0:T(1,128)}', space=vmem, size = 0x12000, scoped, tag = 'internal scratch']
  %s0 = inlined_call_operand.vmem [shape: f32[128,36], index: 0, kind: input, shape index: {}]
  %s1 = inlined_call_operand.vmem [shape: f32[36,128], index: 1, kind: input, shape index: {}]
  %s2 = inlined_call_operand.vmem [shape: f32[1,128], index: 2, kind: input, shape index: {}]
  %s3 = inlined_call_operand.vmem [shape: f32[1,128], index: 3, kind: input, shape index: {}]
  %s4 = inlined_call_operand.vmem [shape: f32[4,128], index: 4, kind: input, shape index: {}]
  %s5 = inlined_call_operand.vmem [shape: f32[128,128], index: 5, kind: output, shape index: {0}]
  %s6 = inlined_call_operand.vmem [shape: f32[128,128], index: 6, kind: output, shape index: {1}]
  %7 = xla_tuple %s5, %s6
  %s8 = sld [smem:[#allocation0]]
  $region61: #{a_call__.4} parent=0
    _
  %s10 = ssub.s32 1, %s8
  %s11 = scalar_select 0, %s10, %s8
  loop: start=0, step=1, limit=4
  $region2: #{a_call__.4} parent=0 // loop_pre_header
    _
  $region3: #{a_call__.4} parent=0 // loop_header
    %s13 = sphi 0, %s17
    %p14 = scmp.ge.s32.totalorder %s13, 4
    %s23 = sphi 0, %s25
    %s26 = sphi 0, %s23
    %s27 = sphi 0, %s26
    %s43 = sphi 0, %s27
    %s47 = sphi 0, %s47
    %s49 = sphi 0, %s47
    %s50 = sphi 0, %s49
    %s64 = sphi 0, %s50
    %s68 = sphi 0, %s68
    %s70 = sphi 0, %s68
    %s71 = sphi 0, %s70
    %s85 = sphi 0, %s71
    %s89 = sphi 0, %s89
    %s91 = sphi 0, %s89
    %s92 = sphi 0, %s91
    %s106 = sphi 0, %s92
    %s110 = sphi 0, %s110
    %s112 = sphi 0, %s110
    %s113 = sphi 0, %s112
    %s127 = sphi 0, %s113
    %s133 = sphi 0, %s135
    %s136 = sphi 0, %s133
    %s137 = sphi 0, %s136
    %s153 = sphi 0, %s137
    %s159 = sphi 0, %s161
    %s162 = sphi 0, %s159
    %s163 = sphi 0, %s162
    %s179 = sphi 0, %s163
  $region4: #{a_call__.4} parent=0 // loop_header_branch
    %16 = sbr.rel (%p14) target = $region8
  $region5: #{a_call__.4} parent=0 // loop_body
    %s18 = ssub.s32 %s13, 1
    %s19 = ssub.s32 %s13, 2
    %s20 = sadd.s32 %s13, 1
    %s21 = ssub.s32 %s13, %s20
    %p22 = scmp.eq.s32.totalorder %s21, 0
    %s24 = sadd.s32 %s23, 1
    %s25 = scalar_select %p22, %s23, %s24
    %p28 = pneg %p22
    %p29 = scmp.eq.s32.totalorder %s13, 1
    %p30 = por %p28, %p29
    %p31 = scmp.ne.s32.totalorder %s23, %s26
    %p32 = scmp.eq.s32.totalorder %s13, 0
    %p33 = por %p31, %p32
    %p34 = scmp.ne.s32.totalorder %s23, %s26
    %p35 = scmp.eq.s32.totalorder %s18, 1
    %p36 = por %p34, %p35
    %p37 = scmp.ne.s32.totalorder %s26, %s27
    %p38 = scmp.eq.s32.totalorder %s18, 0
    %p39 = por %p37, %p38
    %p40 = scmp.ne.s32.totalorder %s26, %s27
    %p41 = scmp.eq.s32.totalorder %s19, 1
    %p42 = por %p40, %p41
    %p44 = scmp.ne.s32.totalorder %s27, %s43
    %p45 = scmp.eq.s32.totalorder %s19, 0
    %p46 = por %p44, %p45
    %s48 = sadd.s32 %s47, 1
    %p51 = scmp.eq.s32.totalorder %s13, 1
    %p52 = scmp.ne.s32.totalorder %s47, %s49
    %p53 = scmp.eq.s32.totalorder %s13, 0
    %p54 = por %p52, %p53
    %p55 = scmp.ne.s32.totalorder %s47, %s49
    %p56 = scmp.eq.s32.totalorder %s18, 1
    %p57 = por %p55, %p56
    %p58 = scmp.ne.s32.totalorder %s49, %s50
    %p59 = scmp.eq.s32.totalorder %s18, 0
    %p60 = por %p58, %p59
    %p61 = scmp.ne.s32.totalorder %s49, %s50
    %p62 = scmp.eq.s32.totalorder %s19, 1
    %p63 = por %p61, %p62
    %p65 = scmp.ne.s32.totalorder %s50, %s64
    %p66 = scmp.eq.s32.totalorder %s19, 0
    %p67 = por %p65, %p66
    %s69 = sadd.s32 %s68, 1
    %p72 = scmp.eq.s32.totalorder %s13, 1
    %p73 = scmp.ne.s32.totalorder %s68, %s70
    %p74 = scmp.eq.s32.totalorder %s13, 0
    %p75 = por %p73, %p74
    %p76 = scmp.ne.s32.totalorder %s68, %s70
    %p77 = scmp.eq.s32.totalorder %s18, 1
    %p78 = por %p76, %p77
    %p79 = scmp.ne.s32.totalorder %s70, %s71
    %p80 = scmp.eq.s32.totalorder %s18, 0
    %p81 = por %p79, %p80
    %p82 = scmp.ne.s32.totalorder %s70, %s71
    %p83 = scmp.eq.s32.totalorder %s19, 1
    %p84 = por %p82, %p83
    %p86 = scmp.ne.s32.totalorder %s71, %s85
    %p87 = scmp.eq.s32.totalorder %s19, 0
    %p88 = por %p86, %p87
    %s90 = sadd.s32 %s89, 1
    %p93 = scmp.eq.s32.totalorder %s13, 1
    %p94 = scmp.ne.s32.totalorder %s89, %s91
    %p95 = scmp.eq.s32.totalorder %s13, 0
    %p96 = por %p94, %p95
    %p97 = scmp.ne.s32.totalorder %s89, %s91
    %p98 = scmp.eq.s32.totalorder %s18, 1
    %p99 = por %p97, %p98
    %p100 = scmp.ne.s32.totalorder %s91, %s92
    %p101 = scmp.eq.s32.totalorder %s18, 0
    %p102 = por %p100, %p101
    %p103 = scmp.ne.s32.totalorder %s91, %s92
    %p104 = scmp.eq.s32.totalorder %s19, 1
    %p105 = por %p103, %p104
    %p107 = scmp.ne.s32.totalorder %s92, %s106
    %p108 = scmp.eq.s32.totalorder %s19, 0
    %p109 = por %p107, %p108
    %s111 = sadd.s32 %s110, 1
    %p114 = scmp.eq.s32.totalorder %s13, 1
    %p115 = scmp.ne.s32.totalorder %s110, %s112
    %p116 = scmp.eq.s32.totalorder %s13, 0
    %p117 = por %p115, %p116
    %p118 = scmp.ne.s32.totalorder %s110, %s112
    %p119 = scmp.eq.s32.totalorder %s18, 1
    %p120 = por %p118, %p119
    %p121 = scmp.ne.s32.totalorder %s112, %s113
    %p122 = scmp.eq.s32.totalorder %s18, 0
    %p123 = por %p121, %p122
    %p124 = scmp.ne.s32.totalorder %s112, %s113
    %p125 = scmp.eq.s32.totalorder %s19, 1
    %p126 = por %p124, %p125
    %p128 = scmp.ne.s32.totalorder %s113, %s127
    %p129 = scmp.eq.s32.totalorder %s19, 0
    %p130 = por %p128, %p129
    %s131 = ssub.s32 %s13, %s20
    %p132 = scmp.eq.s32.totalorder %s131, 0
    %s134 = sadd.s32 %s133, 1
    %s135 = scalar_select %p132, %s133, %s134
    %p138 = pneg %p132
    %p139 = scmp.eq.s32.totalorder %s13, 1
    %p140 = por %p138, %p139
    %p141 = scmp.ne.s32.totalorder %s133, %s136
    %p142 = scmp.eq.s32.totalorder %s13, 0
    %p143 = por %p141, %p142
    %p144 = scmp.ne.s32.totalorder %s133, %s136
    %p145 = scmp.eq.s32.totalorder %s18, 1
    %p146 = por %p144, %p145
    %p147 = scmp.ne.s32.totalorder %s136, %s137
    %p148 = scmp.eq.s32.totalorder %s18, 0
    %p149 = por %p147, %p148
    %p150 = scmp.ne.s32.totalorder %s136, %s137
    %p151 = scmp.eq.s32.totalorder %s19, 1
    %p152 = por %p150, %p151
    %p154 = scmp.ne.s32.totalorder %s137, %s153
    %p155 = scmp.eq.s32.totalorder %s19, 0
    %p156 = por %p154, %p155
    %s157 = ssub.s32 %s13, %s20
    %p158 = scmp.eq.s32.totalorder %s157, 0
    %s160 = sadd.s32 %s159, 1
    %s161 = scalar_select %p158, %s159, %s160
    %p164 = pneg %p158
    %p165 = scmp.eq.s32.totalorder %s13, 1
    %p166 = por %p164, %p165
    %p167 = scmp.ne.s32.totalorder %s159, %s162
    %p168 = scmp.eq.s32.totalorder %s13, 0
    %p169 = por %p167, %p168
    %p170 = scmp.ne.s32.totalorder %s159, %s162
    %p171 = scmp.eq.s32.totalorder %s18, 1
    %p172 = por %p170, %p171
    %p173 = scmp.ne.s32.totalorder %s162, %s163
    %p174 = scmp.eq.s32.totalorder %s18, 0
    %p175 = por %p173, %p174
    %p176 = scmp.ne.s32.totalorder %s162, %s163
    %p177 = scmp.eq.s32.totalorder %s19, 1
    %p178 = por %p176, %p177
    %p180 = scmp.ne.s32.totalorder %s163, %s179
    %p181 = scmp.eq.s32.totalorder %s19, 0
    %p182 = por %p180, %p181
    %p183 = scmp.le.s32.totalorder 1, %s13
    %p184 = scmp.lt.s32.totalorder %s13, 3
    %p185 = pnand %p183, %p184
    %p186 = pneg %p185
    // Predicated region
    $region9: #{a_call__.4} parent=5 // pred_check
      _
    $region10: #{a_call__.4} parent=5 // pred_check_branch
      %188 = sbr.rel (%p185) target = $region12
    $region11: #{a_call__.4} parent=5 // pred_region
      %s189 = ssub.s32 %s13, 1
      // Predicated region
      $region13: #{a_call__.4} parent=11 // pred_check
        %p190 = pneg %p60
      $region14: #{a_call__.4} parent=11 // pred_check_branch
        %192 = sbr.rel (%p190) target = $region16
      $region15: #{a_call__.4} parent=11 // pred_region
        _
      $region16: #{a_call__.4} parent=11 // pred_fallthru
        _
      // Predicated region
      $region17: #{a_call__.4} parent=11 // pred_check
        %p193 = pneg %p81
      $region18: #{a_call__.4} parent=11 // pred_check_branch
        %195 = sbr.rel (%p193) target = $region20
      $region19: #{a_call__.4} parent=11 // pred_region
        _
      $region20: #{a_call__.4} parent=11 // pred_fallthru
        _
      // Predicated region
      $region21: #{a_call__.4} parent=11 // pred_check
        %p196 = pneg %p102
      $region22: #{a_call__.4} parent=11 // pred_check_branch
        %198 = sbr.rel (%p196) target = $region24
      $region23: #{a_call__.4} parent=11 // pred_region
        _
      $region24: #{a_call__.4} parent=11 // pred_fallthru
        _
      // Predicated region
      $region25: #{a_call__.4} parent=11 // pred_check
        %p199 = pneg %p123
      $region26: #{a_call__.4} parent=11 // pred_check_branch
        %201 = sbr.rel (%p199) target = $region28
      $region27: #{a_call__.4} parent=11 // pred_region
        _
      $region28: #{a_call__.4} parent=11 // pred_fallthru
        _
    $region12: #{a_call__.4} parent=5 // pred_fallthru
      _
    %p202 = scmp.lt.s32.totalorder %s13, 2
    // Predicated region
    $region29: #{a_call__.4} parent=5 // pred_check
      %p203 = pneg %p202
    $region30: #{a_call__.4} parent=5 // pred_check_branch
      %205 = sbr.rel (%p203) target = $region32
    $region31: #{a_call__.4} parent=5 // pred_region
      // Predicated region
      $region33: #{a_call__.4} parent=31 // pred_check
        %p206 = pneg %p33
      $region34: #{a_call__.4} parent=31 // pred_check_branch
        %208 = sbr.rel (%p206) target = $region36
      $region35: #{a_call__.4} parent=31 // pred_region
        %s209 = smul.u32 8, %s13
        %p210 = scmp.lt.s32.totalorder %s209, 15
        %s211 = scalar_select %p210, %s209, 15
        %s212 = smul.addr %s211, 8
        %s213 = scalar_lea.vmem %s0, %s212
        %s214 = smul.u32 8, %s13
      $region36: #{a_call__.4} parent=31 // pred_fallthru
        _
    $region32: #{a_call__.4} parent=5 // pred_fallthru
      _
    %p215 = scmp.le.s32.totalorder 1, %s13
    %p216 = scmp.lt.s32.totalorder %s13, 3
    %p217 = pnand %p215, %p216
    %p218 = pneg %p217
    // Predicated region
    $region37: #{a_call__.4} parent=5 // pred_check
      _
    $region38: #{a_call__.4} parent=5 // pred_check_branch
      %220 = sbr.rel (%p217) target = $region40
    $region39: #{a_call__.4} parent=5 // pred_region
      %s221 = ssub.s32 %s13, 1
      %s222 = smul.u32 8, %s18
      %p223 = scmp.lt.s32.totalorder %s222, 15
      %s224 = scalar_select %p223, %s222, 15
      %s225 = smul.addr %s224, 8
      %s226 = scalar_lea.vmem %s0, %s225
      %p227 = pneg %p39
      %p228 = pneg %p36
      %p229 = pneg %p60
      %p230 = pneg %p57
      %p231 = pneg %p81
      %p232 = pneg %p78
      %p233 = pneg %p102
      %p234 = pneg %p99
      %p235 = pneg %p123
      %p236 = pneg %p120
      %p237 = pneg %p149
      %p238 = pneg %p146
      %s239 = smul.u32 8, %s18
      %p240 = scmp.lt.s32.totalorder %s239, 15
      %s241 = scalar_select %p240, %s239, 15
      %s242 = smul.addr %s241, 8
      %s243 = scalar_lea.vmem %s5, %s242
      %p244 = pneg %p175
      %p245 = pneg %p172
      %s246 = smul.u32 8, %s18
      %p247 = scmp.lt.s32.totalorder %s246, 15
      %s248 = scalar_select %p247, %s246, 15
      %s249 = smul.addr %s248, 8
      %s250 = scalar_lea.vmem %s6, %s249
      %s251 = smul.u32 8, %s18
      %p252 = scmp.lt.s32.totalorder %s251, 15
      %s253 = scalar_select %p252, %s251, 15
      %s254 = smul.addr %s253, 8
      %s255 = scalar_lea.vmem %s0, %s254
      %s256 = smul.u32 8, %s18
      %s257 = smul.u32 8, %s18
      %p258 = scmp.lt.s32.totalorder %s257, 15
      %s259 = scalar_select %p258, %s257, 15
      %s260 = smul.addr %s259, 8
      %s261 = scalar_lea.vmem %s5, %s260
      %s262 = smul.u32 8, %s18
      %s263 = smul.u32 8, %s18
      %p264 = scmp.lt.s32.totalorder %s263, 15
      %s265 = scalar_select %p264, %s263, 15
      %s266 = smul.addr %s265, 8
      %s267 = scalar_lea.vmem %s6, %s266
      %s268 = smul.u32 8, %s18
      %v269 = vld [vmem:[%s255] sm:$0xff]
      %v270 = vld [vmem:[%s255 + $0x8] sm:$0xff]
      %v271 = vld [vmem:[%s255 + $0x10] sm:$0xff]
      %v272 = vld [vmem:[%s255 + $0x18] sm:$0xff]
      %v273 = vld [vmem:[%s255 + $0x20] sm:$0xff]
      %v274 = vld [vmem:[%s255 + $0x28] sm:$0xff]
      %v275 = vld [vmem:[%s255 + $0x30] sm:$0xff]
      %v276 = vld [vmem:[%s255 + $0x38] sm:$0xff]
      %v277 = vld [vmem:[%s1] sm:$0xff]
      %v278 = vld [vmem:[%s1 + $0x8] sm:$0xff]
      %v279 = vld [vmem:[%s1 + $0x10] sm:$0xff]
      %v280 = vld [vmem:[%s1 + $0x18] sm:$0xff]
      %v281 = vld [vmem:[%s1 + $0x20] sm:$0xf]
      %vm282 = vcmask 293888
      %v284 = vsel %vm282, %v269, 0
      %v287 = vsel %vm282, %v270, 0
      %v290 = vsel %vm282, %v271, 0
      %v293 = vsel %vm282, %v272, 0
      %v296 = vsel %vm282, %v273, 0
      %v299 = vsel %vm282, %v274, 0
      %v302 = vsel %vm282, %v275, 0
      %v305 = vsel %vm282, %v276, 0
      %vm307 = vcmask 1043456
      %v309 = vsel %vm307, %v281, 0
      %311 = vmatprep.subr.mxu0 0.0
      %312 = vmatpush1.msra.mxu0 0.0
      %313 = vmatprep.subr.mxu0 0.0
      %314 = vmatpush1.msra.mxu0 0.0
      %315 = vmatprep.subr.mxu0 0.0
      %316 = vmatpush1.msra.mxu0 0.0
      %317 = vmatprep.subr.mxu0 0.0
      %318 = vmatpush1.msra.mxu0 0.0
      %319 = vmatprep.subr.mxu0 0.0
      %320 = vmatpush1.msra.mxu0 0.0
      %321 = vmatprep.subr.mxu0 0.0
      %322 = vmatpush1.msra.mxu0 0.0
      %323 = vmatprep.subr.mxu0 0.0
      %324 = vmatpush1.msra.mxu0 0.0
      %325 = vmatprep.subr.mxu0 0.0
      %326 = vmatpush1.msra.mxu0 0.0
      %327 = vmatprep.subr.mxu0 0.0
      %328 = vmatpush1.msra.mxu0 0.0
      %329 = vmatprep.subr.mxu0 0.0
      %330 = vmatpush1.msra.mxu0 0.0
      %331 = vmatprep.subr.mxu0 0.0
      %332 = vmatpush1.msra.mxu0 0.0
      %333 = vmatprep.subr.mxu0 0.0
      %334 = vmatpush1.msra.mxu0 %v309
      %335 = vmatprep.subr.mxu0 0.0
      %336 = vmatpush1.msra.mxu0 %v280
      %337 = vmatprep.subr.mxu0 0.0
      %338 = vmatpush1.msra.mxu0 %v279
      %339 = vmatprep.subr.mxu0 0.0
      %340 = vmatpush1.msra.mxu0 %v278
      %341 = vmatprep.subr.mxu0 0.0
      %342 = vmatpush1.msra.mxu0 %v277
      %343 = vmatprep.subr.mxu0 0.0
      %344 = vmatpush2.msra.mxu0 0.0
      %345 = vmatprep.subr.mxu0 0.0
      %346 = vmatpush2.msra.mxu0 0.0
      %347 = vmatprep.subr.mxu0 0.0
      %348 = vmatpush2.msra.mxu0 0.0
      %349 = vmatprep.subr.mxu0 0.0
      %350 = vmatpush2.msra.mxu0 0.0
      %351 = vmatprep.subr.mxu0 0.0
      %352 = vmatpush2.msra.mxu0 0.0
      %353 = vmatprep.subr.mxu0 0.0
      %354 = vmatpush2.msra.mxu0 0.0
      %355 = vmatprep.subr.mxu0 0.0
      %356 = vmatpush2.msra.mxu0 0.0
      %357 = vmatprep.subr.mxu0 0.0
      %358 = vmatpush2.msra.mxu0 0.0
      %359 = vmatprep.subr.mxu0 0.0
      %360 = vmatpush2.msra.mxu0 0.0
      %361 = vmatprep.subr.mxu0 0.0
      %362 = vmatpush2.msra.mxu0 0.0
      %363 = vmatprep.subr.mxu0 0.0
      %364 = vmatpush2.msra.mxu0 0.0
      %365 = vmatprep.subr.mxu0 0.0
      %366 = vmatpush2.msra.mxu0 0.0
      %367 = vmatprep.subr.mxu0 0.0
      %368 = vmatpush2.msra.mxu0 0.0
      %369 = vmatprep.subr.mxu0 0.0
      %370 = vmatpush2.msra.mxu0 0.0
      %371 = vmatprep.subr.mxu0 0.0
      %372 = vmatpush2.msra.mxu0 0.0
      %373 = vmatprep.subr.mxu0 0.0
      %374 = vmatpush2.msra.mxu0 0.0
      %375 = vmatprep.mubr.f32.mxu0 0.0
      %376 = vmatmul.mubr.f32.gmra.mxu0 %v284
      %v377 = vpop.f32.mrf.mxu0
      %v378 = vadd.f32 0.0, %v377
      %v379 = vpop.f32.mrf.mxu0
      %380 = vmatprep.mubr.f32.mxu0 0.0
      %381 = vmatmul.mubr.f32.gmra.mxu0 %v287
      %v382 = vpop.f32.mrf.mxu0
      %v383 = vadd.f32 0.0, %v382
      %v384 = vpop.f32.mrf.mxu0
      %385 = vmatprep.mubr.f32.mxu0 0.0
      %386 = vmatmul.mubr.f32.gmra.mxu0 %v290
      %v387 = vpop.f32.mrf.mxu0
      %v388 = vadd.f32 0.0, %v387
      %v389 = vpop.f32.mrf.mxu0
      %390 = vmatprep.mubr.f32.mxu0 0.0
      %391 = vmatmul.mubr.f32.gmra.mxu0 %v293
      %v392 = vpop.f32.mrf.mxu0
      %v393 = vadd.f32 0.0, %v392
      %v394 = vpop.f32.mrf.mxu0
      %395 = vmatprep.mubr.f32.mxu0 0.0
      %396 = vmatmul.mubr.f32.gmra.mxu0 %v296
      %v397 = vpop.f32.mrf.mxu0
      %v398 = vadd.f32 0.0, %v397
      %v399 = vpop.f32.mrf.mxu0
      %400 = vmatprep.mubr.f32.mxu0 0.0
      %401 = vmatmul.mubr.f32.gmra.mxu0 %v299
      %v402 = vpop.f32.mrf.mxu0
      %v403 = vadd.f32 0.0, %v402
      %v404 = vpop.f32.mrf.mxu0
      %405 = vmatprep.mubr.f32.mxu0 0.0
      %406 = vmatmul.mubr.f32.gmra.mxu0 %v302
      %v407 = vpop.f32.mrf.mxu0
      %v408 = vadd.f32 0.0, %v407
      %v409 = vpop.f32.mrf.mxu0
      %410 = vmatprep.mubr.f32.mxu0 0.0
      %411 = vmatmul.mubr.f32.gmra.mxu0 %v305
      %v412 = vpop.f32.mrf.mxu0
      %v413 = vadd.f32 0.0, %v412
      %v414 = vpop.f32.mrf.mxu0
      %415 = vdwg.mxu0
      %v416 = vld [vmem:[%s2] sm:$0x1]
      %v418 = vlaneseq
      %v419 = vshrl.u32 %v418, 7
      %v420 = vsub.s32 0, %v419
      %v421 = vrot.slane %v416, %v420
      %v423 = vmul.f32 %v378, %v421
      %v424 = vmul.f32 %v383, %v421
      %v425 = vmul.f32 %v388, %v421
      %v426 = vmul.f32 %v393, %v421
      %v427 = vmul.f32 %v398, %v421
      %v428 = vmul.f32 %v403, %v421
      %v429 = vmul.f32 %v408, %v421
      %v430 = vmul.f32 %v413, %v421
      %v431 = vld [vmem:[%s3] sm:$0x1]
      %v433 = vlaneseq
      %v434 = vshrl.u32 %v433, 7
      %v435 = vsub.s32 0, %v434
      %v436 = vrot.slane %v431, %v435
      %v438 = vadd.f32 %v423, %v436
      %v439 = vadd.f32 %v424, %v436
      %v440 = vadd.f32 %v425, %v436
      %v441 = vadd.f32 %v426, %v436
      %v442 = vadd.f32 %v427, %v436
      %v443 = vadd.f32 %v428, %v436
      %v444 = vadd.f32 %v429, %v436
      %v445 = vadd.f32 %v430, %v436
      %v446 = vmax.f32 %v438, 0.0
      %v447 = vmax.f32 %v439, 0.0
      %v448 = vmax.f32 %v440, 0.0
      %v449 = vmax.f32 %v441, 0.0
      %v450 = vmax.f32 %v442, 0.0
      %v451 = vmax.f32 %v443, 0.0
      %v452 = vmax.f32 %v444, 0.0
      %v453 = vmax.f32 %v445, 0.0
      %454 = vst [vmem:[%s261] sm:$0xff] %v446
      %455 = vst [vmem:[%s261 + $0x8] sm:$0xff] %v447
      %456 = vst [vmem:[%s261 + $0x10] sm:$0xff] %v448
      %457 = vst [vmem:[%s261 + $0x18] sm:$0xff] %v449
      %458 = vst [vmem:[%s261 + $0x20] sm:$0xff] %v450
      %459 = vst [vmem:[%s261 + $0x28] sm:$0xff] %v451
      %460 = vst [vmem:[%s261 + $0x30] sm:$0xff] %v452
      %461 = vst [vmem:[%s261 + $0x38] sm:$0xff] %v453
      %v462 = vld [vmem:[%s255] sm:$0xff]
      %v463 = vld [vmem:[%s255 + $0x8] sm:$0xff]
      %v464 = vld [vmem:[%s255 + $0x10] sm:$0xff]
      %v465 = vld [vmem:[%s255 + $0x18] sm:$0xff]
      %v466 = vld [vmem:[%s255 + $0x20] sm:$0xff]
      %v467 = vld [vmem:[%s255 + $0x28] sm:$0xff]
      %v468 = vld [vmem:[%s255 + $0x30] sm:$0xff]
      %v469 = vld [vmem:[%s255 + $0x38] sm:$0xff]
      %v470 = vld [vmem:[%s4] sm:$0xf]
      %479 = vrot.lane.b32.xlu0 %v462, 112
      %v480 = vpop.permute.xlu0 %479
      %481 = vrot.lane.b32.xlu0 %v463, 112
      %v482 = vpop.permute.xlu0 %481
      %483 = vrot.lane.b32.xlu0 %v464, 112
      %v484 = vpop.permute.xlu0 %483
      %485 = vrot.lane.b32.xlu0 %v465, 112
      %v486 = vpop.permute.xlu0 %485
      %487 = vrot.lane.b32.xlu0 %v466, 112
      %v488 = vpop.permute.xlu0 %487
      %489 = vrot.lane.b32.xlu0 %v467, 112
      %v490 = vpop.permute.xlu0 %489
      %491 = vrot.lane.b32.xlu0 %v468, 112
      %v492 = vpop.permute.xlu0 %491
      %493 = vrot.lane.b32.xlu0 %v469, 112
      %v494 = vpop.permute.xlu0 %493
      %vm495 = vcmask 31744
      %v496 = vsel %vm495, %v480, 0
      %v498 = vsel %vm495, %v482, 0
      %v500 = vsel %vm495, %v484, 0
      %v502 = vsel %vm495, %v486, 0
      %v504 = vsel %vm495, %v488, 0
      %v506 = vsel %vm495, %v490, 0
      %v508 = vsel %vm495, %v492, 0
      %v510 = vsel %vm495, %v494, 0
      %v513 = vsel %vm307, %v470, 0
      %515 = vmatprep.subr.mxu0 0.0
      %516 = vmatpush1.msra.mxu0 0.0
      %517 = vmatprep.subr.mxu0 0.0
      %518 = vmatpush1.msra.mxu0 0.0
      %519 = vmatprep.subr.mxu0 0.0
      %520 = vmatpush1.msra.mxu0 0.0
      %521 = vmatprep.subr.mxu0 0.0
      %522 = vmatpush1.msra.mxu0 0.0
      %523 = vmatprep.subr.mxu0 0.0
      %524 = vmatpush1.msra.mxu0 0.0
      %525 = vmatprep.subr.mxu0 0.0
      %526 = vmatpush1.msra.mxu0 0.0
      %527 = vmatprep.subr.mxu0 0.0
      %528 = vmatpush1.msra.mxu0 0.0
      %529 = vmatprep.subr.mxu0 0.0
      %530 = vmatpush1.msra.mxu0 0.0
      %531 = vmatprep.subr.mxu0 0.0
      %532 = vmatpush1.msra.mxu0 0.0
      %533 = vmatprep.subr.mxu0 0.0
      %534 = vmatpush1.msra.mxu0 0.0
      %535 = vmatprep.subr.mxu0 0.0
      %536 = vmatpush1.msra.mxu0 0.0
      %537 = vmatprep.subr.mxu0 0.0
      %538 = vmatpush1.msra.mxu0 0.0
      %539 = vmatprep.subr.mxu0 0.0
      %540 = vmatpush1.msra.mxu0 0.0
      %541 = vmatprep.subr.mxu0 0.0
      %542 = vmatpush1.msra.mxu0 0.0
      %543 = vmatprep.subr.mxu0 0.0
      %544 = vmatpush1.msra.mxu0 0.0
      %545 = vmatprep.subr.mxu0 0.0
      %546 = vmatpush1.msra.mxu0 %v513
      %547 = vmatprep.subr.mxu0 0.0
      %548 = vmatpush2.msra.mxu0 0.0
      %549 = vmatprep.subr.mxu0 0.0
      %550 = vmatpush2.msra.mxu0 0.0
      %551 = vmatprep.subr.mxu0 0.0
      %552 = vmatpush2.msra.mxu0 0.0
      %553 = vmatprep.subr.mxu0 0.0
      %554 = vmatpush2.msra.mxu0 0.0
      %555 = vmatprep.subr.mxu0 0.0
      %556 = vmatpush2.msra.mxu0 0.0
      %557 = vmatprep.subr.mxu0 0.0
      %558 = vmatpush2.msra.mxu0 0.0
      %559 = vmatprep.subr.mxu0 0.0
      %560 = vmatpush2.msra.mxu0 0.0
      %561 = vmatprep.subr.mxu0 0.0
      %562 = vmatpush2.msra.mxu0 0.0
      %563 = vmatprep.subr.mxu0 0.0
      %564 = vmatpush2.msra.mxu0 0.0
      %565 = vmatprep.subr.mxu0 0.0
      %566 = vmatpush2.msra.mxu0 0.0
      %567 = vmatprep.subr.mxu0 0.0
      %568 = vmatpush2.msra.mxu0 0.0
      %569 = vmatprep.subr.mxu0 0.0
      %570 = vmatpush2.msra.mxu0 0.0
      %571 = vmatprep.subr.mxu0 0.0
      %572 = vmatpush2.msra.mxu0 0.0
      %573 = vmatprep.subr.mxu0 0.0
      %574 = vmatpush2.msra.mxu0 0.0
      %575 = vmatprep.subr.mxu0 0.0
      %576 = vmatpush2.msra.mxu0 0.0
      %577 = vmatprep.subr.mxu0 0.0
      %578 = vmatpush2.msra.mxu0 0.0
      %579 = vmatprep.mubr.f32.mxu0 0.0
      %580 = vmatmul.mubr.f32.gmra.mxu0 %v496
      %v581 = vpop.f32.mrf.mxu0
      %v582 = vadd.f32 0.0, %v581
      %v583 = vpop.f32.mrf.mxu0
      %584 = vmatprep.mubr.f32.mxu0 0.0
      %585 = vmatmul.mubr.f32.gmra.mxu0 %v498
      %v586 = vpop.f32.mrf.mxu0
      %v587 = vadd.f32 0.0, %v586
      %v588 = vpop.f32.mrf.mxu0
      %589 = vmatprep.mubr.f32.mxu0 0.0
      %590 = vmatmul.mubr.f32.gmra.mxu0 %v500
      %v591 = vpop.f32.mrf.mxu0
      %v592 = vadd.f32 0.0, %v591
      %v593 = vpop.f32.mrf.mxu0
      %594 = vmatprep.mubr.f32.mxu0 0.0
      %595 = vmatmul.mubr.f32.gmra.mxu0 %v502
      %v596 = vpop.f32.mrf.mxu0
      %v597 = vadd.f32 0.0, %v596
      %v598 = vpop.f32.mrf.mxu0
      %599 = vmatprep.mubr.f32.mxu0 0.0
      %600 = vmatmul.mubr.f32.gmra.mxu0 %v504
      %v601 = vpop.f32.mrf.mxu0
      %v602 = vadd.f32 0.0, %v601
      %v603 = vpop.f32.mrf.mxu0
      %604 = vmatprep.mubr.f32.mxu0 0.0
      %605 = vmatmul.mubr.f32.gmra.mxu0 %v506
      %v606 = vpop.f32.mrf.mxu0
      %v607 = vadd.f32 0.0, %v606
      %v608 = vpop.f32.mrf.mxu0
      %609 = vmatprep.mubr.f32.mxu0 0.0
      %610 = vmatmul.mubr.f32.gmra.mxu0 %v508
      %v611 = vpop.f32.mrf.mxu0
      %v612 = vadd.f32 0.0, %v611
      %v613 = vpop.f32.mrf.mxu0
      %614 = vmatprep.mubr.f32.mxu0 0.0
      %615 = vmatmul.mubr.f32.gmra.mxu0 %v510
      %v616 = vpop.f32.mrf.mxu0
      %v617 = vadd.f32 0.0, %v616
      %v618 = vpop.f32.mrf.mxu0
      %619 = vdwg.mxu0
      %620 = vst [vmem:[%s267] sm:$0xff] %v582
      %621 = vst [vmem:[%s267 + $0x8] sm:$0xff] %v587
      %622 = vst [vmem:[%s267 + $0x10] sm:$0xff] %v592
      %623 = vst [vmem:[%s267 + $0x18] sm:$0xff] %v597
      %624 = vst [vmem:[%s267 + $0x20] sm:$0xff] %v602
      %625 = vst [vmem:[%s267 + $0x28] sm:$0xff] %v607
      %626 = vst [vmem:[%s267 + $0x30] sm:$0xff] %v612
      %627 = vst [vmem:[%s267 + $0x38] sm:$0xff] %v617
      %s628 = smul.u32 8, %s18
      %p629 = scmp.lt.s32.totalorder %s628, 15
      %s630 = scalar_select %p629, %s628, 15
      %s631 = smul.addr %s630, 8
      %s632 = scalar_lea.vmem %s5, %s631
      %s633 = smul.u32 8, %s18
      %p634 = scmp.lt.s32.totalorder %s633, 15
      %s635 = scalar_select %p634, %s633, 15
      %s636 = smul.addr %s635, 8
      %s637 = scalar_lea.vmem %s6, %s636
      // Predicated region
      $region41: #{a_call__.4} parent=39 // pred_check
        %p638 = pneg %p146
      $region42: #{a_call__.4} parent=39 // pred_check_branch
        %640 = sbr.rel (%p638) target = $region44
      $region43: #{a_call__.4} parent=39 // pred_region
        %s641 = smul.u32 8, %s18
      $region44: #{a_call__.4} parent=39 // pred_fallthru
        _
      // Predicated region
      $region45: #{a_call__.4} parent=39 // pred_check
        %p642 = pneg %p172
      $region46: #{a_call__.4} parent=39 // pred_check_branch
        %644 = sbr.rel (%p642) target = $region48
      $region47: #{a_call__.4} parent=39 // pred_region
        %s645 = smul.u32 8, %s18
      $region48: #{a_call__.4} parent=39 // pred_fallthru
        _
    $region40: #{a_call__.4} parent=5 // pred_fallthru
      _
    %p646 = scmp.le.s32.totalorder 2, %s13
    // Predicated region
    $region49: #{a_call__.4} parent=5 // pred_check
      %p647 = pneg %p646
    $region50: #{a_call__.4} parent=5 // pred_check_branch
      %649 = sbr.rel (%p647) target = $region52
    $region51: #{a_call__.4} parent=5 // pred_region
      %s650 = ssub.s32 %s13, 2
      // Predicated region
      $region53: #{a_call__.4} parent=51 // pred_check
        %p651 = pneg %p152
      $region54: #{a_call__.4} parent=51 // pred_check_branch
        %653 = sbr.rel (%p651) target = $region56
      $region55: #{a_call__.4} parent=51 // pred_region
        %s654 = smul.u32 8, %s19
        %p655 = scmp.lt.s32.totalorder %s654, 15
        %s656 = scalar_select %p655, %s654, 15
        %s657 = smul.addr %s656, 8
        %s658 = scalar_lea.vmem %s5, %s657
      $region56: #{a_call__.4} parent=51 // pred_fallthru
        _
      // Predicated region
      $region57: #{a_call__.4} parent=51 // pred_check
        %p659 = pneg %p178
      $region58: #{a_call__.4} parent=51 // pred_check_branch
        %661 = sbr.rel (%p659) target = $region60
      $region59: #{a_call__.4} parent=51 // pred_region
        %s662 = smul.u32 8, %s19
        %p663 = scmp.lt.s32.totalorder %s662, 15
        %s664 = scalar_select %p663, %s662, 15
        %s665 = smul.addr %s664, 8
        %s666 = scalar_lea.vmem %s6, %s665
      $region60: #{a_call__.4} parent=51 // pred_fallthru
        _
    $region52: #{a_call__.4} parent=5 // pred_fallthru
      _
  $region6: #{a_call__.4} parent=0 // loop_footer
    %s17 = sadd.s32 1, %s13
  $region7: #{a_call__.4} parent=0 // loop_footer_branch
    %12 = sbr.rel target = $region3
  $region8: #{a_call__.4} parent=0 // loop_exit
    _

// kernel: a_call__.5
$region0: #{a_call__.5}
  #allocation0 [shape = 'u32[]', space=smem, size = 0x4, offset = 0x4, fixed_abs, tag = 'smem constant byte address 0x4 - core index']
  #allocation1 [shape = 'u32[144,128]{1,0:T(1,128)}', space=vmem, size = 0x12000, scoped, tag = 'internal scratch']
  %s0 = inlined_call_operand.vmem [shape: f32[128,1152], index: 0, kind: input, shape index: {}]
  %s1 = inlined_call_operand.vmem [shape: f32[1152,128], index: 1, kind: input, shape index: {}]
  %s2 = inlined_call_operand.vmem [shape: f32[128,128], index: 2, kind: input, shape index: {}]
  %s3 = inlined_call_operand.vmem [shape: f32[128,128], index: 3, kind: output, shape index: {}]
  %s4 = sld [smem:[#allocation0]]
  $region45: #{a_call__.5} parent=0
    _
  %s6 = ssub.s32 1, %s4
  %s7 = scalar_select 0, %s6, %s4
  loop: start=0, step=1, limit=4
  $region2: #{a_call__.5} parent=0 // loop_pre_header
    _
  $region3: #{a_call__.5} parent=0 // loop_header
    %s9 = sphi 0, %s13
    %p10 = scmp.ge.s32.totalorder %s9, 4
    %s19 = sphi 0, %s21
    %s22 = sphi 0, %s19
    %s23 = sphi 0, %s22
    %s39 = sphi 0, %s23
    %s43 = sphi 0, %s43
    %s45 = sphi 0, %s43
    %s46 = sphi 0, %s45
    %s60 = sphi 0, %s46
    %s66 = sphi 0, %s68
    %s69 = sphi 0, %s66
    %s70 = sphi 0, %s69
    %s86 = sphi 0, %s70
    %s92 = sphi 0, %s94
    %s95 = sphi 0, %s92
    %s96 = sphi 0, %s95
    %s112 = sphi 0, %s96
  $region4: #{a_call__.5} parent=0 // loop_header_branch
    %12 = sbr.rel (%p10) target = $region8
  $region5: #{a_call__.5} parent=0 // loop_body
    %s14 = ssub.s32 %s9, 1
    %s15 = ssub.s32 %s9, 2
    %s16 = sadd.s32 %s9, 1
    %s17 = ssub.s32 %s9, %s16
    %p18 = scmp.eq.s32.totalorder %s17, 0
    %s20 = sadd.s32 %s19, 1
    %s21 = scalar_select %p18, %s19, %s20
    %p24 = pneg %p18
    %p25 = scmp.eq.s32.totalorder %s9, 1
    %p26 = por %p24, %p25
    %p27 = scmp.ne.s32.totalorder %s19, %s22
    %p28 = scmp.eq.s32.totalorder %s9, 0
    %p29 = por %p27, %p28
    %p30 = scmp.ne.s32.totalorder %s19, %s22
    %p31 = scmp.eq.s32.totalorder %s14, 1
    %p32 = por %p30, %p31
    %p33 = scmp.ne.s32.totalorder %s22, %s23
    %p34 = scmp.eq.s32.totalorder %s14, 0
    %p35 = por %p33, %p34
    %p36 = scmp.ne.s32.totalorder %s22, %s23
    %p37 = scmp.eq.s32.totalorder %s15, 1
    %p38 = por %p36, %p37
    %p40 = scmp.ne.s32.totalorder %s23, %s39
    %p41 = scmp.eq.s32.totalorder %s15, 0
    %p42 = por %p40, %p41
    %s44 = sadd.s32 %s43, 1
    %p47 = scmp.eq.s32.totalorder %s9, 1
    %p48 = scmp.ne.s32.totalorder %s43, %s45
    %p49 = scmp.eq.s32.totalorder %s9, 0
    %p50 = por %p48, %p49
    %p51 = scmp.ne.s32.totalorder %s43, %s45
    %p52 = scmp.eq.s32.totalorder %s14, 1
    %p53 = por %p51, %p52
    %p54 = scmp.ne.s32.totalorder %s45, %s46
    %p55 = scmp.eq.s32.totalorder %s14, 0
    %p56 = por %p54, %p55
    %p57 = scmp.ne.s32.totalorder %s45, %s46
    %p58 = scmp.eq.s32.totalorder %s15, 1
    %p59 = por %p57, %p58
    %p61 = scmp.ne.s32.totalorder %s46, %s60
    %p62 = scmp.eq.s32.totalorder %s15, 0
    %p63 = por %p61, %p62
    %s64 = ssub.s32 %s9, %s16
    %p65 = scmp.eq.s32.totalorder %s64, 0
    %s67 = sadd.s32 %s66, 1
    %s68 = scalar_select %p65, %s66, %s67
    %p71 = pneg %p65
    %p72 = scmp.eq.s32.totalorder %s9, 1
    %p73 = por %p71, %p72
    %p74 = scmp.ne.s32.totalorder %s66, %s69
    %p75 = scmp.eq.s32.totalorder %s9, 0
    %p76 = por %p74, %p75
    %p77 = scmp.ne.s32.totalorder %s66, %s69
    %p78 = scmp.eq.s32.totalorder %s14, 1
    %p79 = por %p77, %p78
    %p80 = scmp.ne.s32.totalorder %s69, %s70
    %p81 = scmp.eq.s32.totalorder %s14, 0
    %p82 = por %p80, %p81
    %p83 = scmp.ne.s32.totalorder %s69, %s70
    %p84 = scmp.eq.s32.totalorder %s15, 1
    %p85 = por %p83, %p84
    %p87 = scmp.ne.s32.totalorder %s70, %s86
    %p88 = scmp.eq.s32.totalorder %s15, 0
    %p89 = por %p87, %p88
    %s90 = ssub.s32 %s9, %s16
    %p91 = scmp.eq.s32.totalorder %s90, 0
    %s93 = sadd.s32 %s92, 1
    %s94 = scalar_select %p91, %s92, %s93
    %p97 = pneg %p91
    %p98 = scmp.eq.s32.totalorder %s9, 1
    %p99 = por %p97, %p98
    %p100 = scmp.ne.s32.totalorder %s92, %s95
    %p101 = scmp.eq.s32.totalorder %s9, 0
    %p102 = por %p100, %p101
    %p103 = scmp.ne.s32.totalorder %s92, %s95
    %p104 = scmp.eq.s32.totalorder %s14, 1
    %p105 = por %p103, %p104
    %p106 = scmp.ne.s32.totalorder %s95, %s96
    %p107 = scmp.eq.s32.totalorder %s14, 0
    %p108 = por %p106, %p107
    %p109 = scmp.ne.s32.totalorder %s95, %s96
    %p110 = scmp.eq.s32.totalorder %s15, 1
    %p111 = por %p109, %p110
    %p113 = scmp.ne.s32.totalorder %s96, %s112
    %p114 = scmp.eq.s32.totalorder %s15, 0
    %p115 = por %p113, %p114
    %p116 = scmp.le.s32.totalorder 1, %s9
    %p117 = scmp.lt.s32.totalorder %s9, 3
    %p118 = pnand %p116, %p117
    %p119 = pneg %p118
    // Predicated region
    $region9: #{a_call__.5} parent=5 // pred_check
      _
    $region10: #{a_call__.5} parent=5 // pred_check_branch
      %121 = sbr.rel (%p118) target = $region12
    $region11: #{a_call__.5} parent=5 // pred_region
      %s122 = ssub.s32 %s9, 1
      // Predicated region
      $region13: #{a_call__.5} parent=11 // pred_check
        %p123 = pneg %p56
      $region14: #{a_call__.5} parent=11 // pred_check_branch
        %125 = sbr.rel (%p123) target = $region16
      $region15: #{a_call__.5} parent=11 // pred_region
        _
      $region16: #{a_call__.5} parent=11 // pred_fallthru
        _
    $region12: #{a_call__.5} parent=5 // pred_fallthru
      _
    %p126 = scmp.lt.s32.totalorder %s9, 2
    // Predicated region
    $region17: #{a_call__.5} parent=5 // pred_check
      %p127 = pneg %p126
    $region18: #{a_call__.5} parent=5 // pred_check_branch
      %129 = sbr.rel (%p127) target = $region20
    $region19: #{a_call__.5} parent=5 // pred_region
      // Predicated region
      $region21: #{a_call__.5} parent=19 // pred_check
        %p130 = pneg %p29
      $region22: #{a_call__.5} parent=19 // pred_check_branch
        %132 = sbr.rel (%p130) target = $region24
      $region23: #{a_call__.5} parent=19 // pred_region
        %s133 = smul.u32 8, %s9
        %p134 = scmp.lt.s32.totalorder %s133, 15
        %s135 = scalar_select %p134, %s133, 15
        %s136 = smul.addr %s135, 9
        %s137 = smul.addr %s136, 8
        %s138 = scalar_lea.vmem %s0, %s137
        %s139 = smul.u32 8, %s9
      $region24: #{a_call__.5} parent=19 // pred_fallthru
        _
      // Predicated region
      $region25: #{a_call__.5} parent=19 // pred_check
        %p140 = pneg %p76
      $region26: #{a_call__.5} parent=19 // pred_check_branch
        %142 = sbr.rel (%p140) target = $region28
      $region27: #{a_call__.5} parent=19 // pred_region
        %s143 = smul.u32 8, %s9
        %p144 = scmp.lt.s32.totalorder %s143, 15
        %s145 = scalar_select %p144, %s143, 15
        %s146 = smul.addr %s145, 8
        %s147 = scalar_lea.vmem %s2, %s146
        %s148 = smul.u32 8, %s9
      $region28: #{a_call__.5} parent=19 // pred_fallthru
        _
    $region20: #{a_call__.5} parent=5 // pred_fallthru
      _
    %p149 = scmp.le.s32.totalorder 1, %s9
    %p150 = scmp.lt.s32.totalorder %s9, 3
    %p151 = pnand %p149, %p150
    %p152 = pneg %p151
    // Predicated region
    $region29: #{a_call__.5} parent=5 // pred_check
      _
    $region30: #{a_call__.5} parent=5 // pred_check_branch
      %154 = sbr.rel (%p151) target = $region32
    $region31: #{a_call__.5} parent=5 // pred_region
      %s155 = ssub.s32 %s9, 1
      %s156 = smul.u32 8, %s14
      %p157 = scmp.lt.s32.totalorder %s156, 15
      %s158 = scalar_select %p157, %s156, 15
      %s159 = smul.addr %s158, 9
      %s160 = smul.addr %s159, 8
      %s161 = scalar_lea.vmem %s0, %s160
      %p162 = pneg %p35
      %p163 = pneg %p32
      %p164 = pneg %p56
      %p165 = pneg %p53
      %s166 = smul.u32 8, %s14
      %p167 = scmp.lt.s32.totalorder %s166, 15
      %s168 = scalar_select %p167, %s166, 15
      %s169 = smul.addr %s168, 8
      %s170 = scalar_lea.vmem %s2, %s169
      %p171 = pneg %p82
      %p172 = pneg %p79
      %p173 = pneg %p108
      %p174 = pneg %p105
      %s175 = smul.u32 8, %s14
      %p176 = scmp.lt.s32.totalorder %s175, 15
      %s177 = scalar_select %p176, %s175, 15
      %s178 = smul.addr %s177, 8
      %s179 = scalar_lea.vmem %s3, %s178
      %s180 = smul.u32 8, %s14
      %p181 = scmp.lt.s32.totalorder %s180, 15
      %s182 = scalar_select %p181, %s180, 15
      %s183 = smul.addr %s182, 9
      %s184 = smul.addr %s183, 8
      %s185 = scalar_lea.vmem %s0, %s184
      %s186 = smul.u32 8, %s14
      %s187 = smul.u32 8, %s14
      %p188 = scmp.lt.s32.totalorder %s187, 15
      %s189 = scalar_select %p188, %s187, 15
      %s190 = smul.addr %s189, 8
      %s191 = scalar_lea.vmem %s2, %s190
      %s192 = smul.u32 8, %s14
      %s193 = smul.u32 8, %s14
      %p194 = scmp.lt.s32.totalorder %s193, 15
      %s195 = scalar_select %p194, %s193, 15
      %s196 = smul.addr %s195, 8
      %s197 = scalar_lea.vmem %s3, %s196
      %s198 = smul.u32 8, %s14
      %v199 = vld [vmem:[%s185] sm:$0xff]
      %v200 = vld [vmem:[%s185 + $0x8] sm:$0xff]
      %v201 = vld [vmem:[%s185 + $0x10] sm:$0xff]
      %v202 = vld [vmem:[%s185 + $0x18] sm:$0xff]
      %v203 = vld [vmem:[%s185 + $0x20] sm:$0xff]
      %v204 = vld [vmem:[%s185 + $0x28] sm:$0xff]
      %v205 = vld [vmem:[%s185 + $0x30] sm:$0xff]
      %v206 = vld [vmem:[%s185 + $0x38] sm:$0xff]
      %v207 = vld [vmem:[%s185 + $0x40] sm:$0xff]
      %v208 = vld [vmem:[%s185 + $0x48] sm:$0xff]
      %v209 = vld [vmem:[%s185 + $0x50] sm:$0xff]
      %v210 = vld [vmem:[%s185 + $0x58] sm:$0xff]
      %v211 = vld [vmem:[%s185 + $0x60] sm:$0xff]
      %v212 = vld [vmem:[%s185 + $0x68] sm:$0xff]
      %v213 = vld [vmem:[%s185 + $0x70] sm:$0xff]
      %v214 = vld [vmem:[%s185 + $0x78] sm:$0xff]
      %v215 = vld [vmem:[%s185 + $0x80] sm:$0xff]
      %v216 = vld [vmem:[%s185 + $0x88] sm:$0xff]
      %v217 = vld [vmem:[%s185 + $0x90] sm:$0xff]
      %v218 = vld [vmem:[%s185 + $0x98] sm:$0xff]
      %v219 = vld [vmem:[%s185 + $0xa0] sm:$0xff]
      %v220 = vld [vmem:[%s185 + $0xa8] sm:$0xff]
      %v221 = vld [vmem:[%s185 + $0xb0] sm:$0xff]
      %v222 = vld [vmem:[%s185 + $0xb8] sm:$0xff]
      %v223 = vld [vmem:[%s185 + $0xc0] sm:$0xff]
      %v224 = vld [vmem:[%s185 + $0xc8] sm:$0xff]
      %v225 = vld [vmem:[%s185 + $0xd0] sm:$0xff]
      %v226 = vld [vmem:[%s185 + $0xd8] sm:$0xff]
      %v227 = vld [vmem:[%s185 + $0xe0] sm:$0xff]
      %v228 = vld [vmem:[%s185 + $0xe8] sm:$0xff]
      %v229 = vld [vmem:[%s185 + $0xf0] sm:$0xff]
      %v230 = vld [vmem:[%s185 + $0xf8] sm:$0xff]
      %v231 = vld [vmem:[%s185 + $0x100] sm:$0xff]
      %v232 = vld [vmem:[%s185 + $0x108] sm:$0xff]
      %v233 = vld [vmem:[%s185 + $0x110] sm:$0xff]
      %v234 = vld [vmem:[%s185 + $0x118] sm:$0xff]
      %v235 = vld [vmem:[%s185 + $0x120] sm:$0xff]
      %v236 = vld [vmem:[%s185 + $0x128] sm:$0xff]
      %v237 = vld [vmem:[%s185 + $0x130] sm:$0xff]
      %v238 = vld [vmem:[%s185 + $0x138] sm:$0xff]
      %v239 = vld [vmem:[%s185 + $0x140] sm:$0xff]
      %v240 = vld [vmem:[%s185 + $0x148] sm:$0xff]
      %v241 = vld [vmem:[%s185 + $0x150] sm:$0xff]
      %v242 = vld [vmem:[%s185 + $0x158] sm:$0xff]
      %v243 = vld [vmem:[%s185 + $0x160] sm:$0xff]
      %v244 = vld [vmem:[%s185 + $0x168] sm:$0xff]
      %v245 = vld [vmem:[%s185 + $0x170] sm:$0xff]
      %v246 = vld [vmem:[%s185 + $0x178] sm:$0xff]
      %v247 = vld [vmem:[%s185 + $0x180] sm:$0xff]
      %v248 = vld [vmem:[%s185 + $0x188] sm:$0xff]
      %v249 = vld [vmem:[%s185 + $0x190] sm:$0xff]
      %v250 = vld [vmem:[%s185 + $0x198] sm:$0xff]
      %v251 = vld [vmem:[%s185 + $0x1a0] sm:$0xff]
      %v252 = vld [vmem:[%s185 + $0x1a8] sm:$0xff]
      %v253 = vld [vmem:[%s185 + $0x1b0] sm:$0xff]
      %v254 = vld [vmem:[%s185 + $0x1b8] sm:$0xff]
      %v255 = vld [vmem:[%s185 + $0x1c0] sm:$0xff]
      %v256 = vld [vmem:[%s185 + $0x1c8] sm:$0xff]
      %v257 = vld [vmem:[%s185 + $0x1d0] sm:$0xff]
      %v258 = vld [vmem:[%s185 + $0x1d8] sm:$0xff]
      %v259 = vld [vmem:[%s185 + $0x1e0] sm:$0xff]
      %v260 = vld [vmem:[%s185 + $0x1e8] sm:$0xff]
      %v261 = vld [vmem:[%s185 + $0x1f0] sm:$0xff]
      %v262 = vld [vmem:[%s185 + $0x1f8] sm:$0xff]
      %v263 = vld [vmem:[%s185 + $0x200] sm:$0xff]
      %v264 = vld [vmem:[%s185 + $0x208] sm:$0xff]
      %v265 = vld [vmem:[%s185 + $0x210] sm:$0xff]
      %v266 = vld [vmem:[%s185 + $0x218] sm:$0xff]
      %v267 = vld [vmem:[%s185 + $0x220] sm:$0xff]
      %v268 = vld [vmem:[%s185 + $0x228] sm:$0xff]
      %v269 = vld [vmem:[%s185 + $0x230] sm:$0xff]
      %v270 = vld [vmem:[%s185 + $0x238] sm:$0xff]
      %v271 = vld [vmem:[%s1] sm:$0xff]
      %v272 = vld [vmem:[%s1 + $0x8] sm:$0xff]
      %v273 = vld [vmem:[%s1 + $0x10] sm:$0xff]
      %v274 = vld [vmem:[%s1 + $0x18] sm:$0xff]
      %v275 = vld [vmem:[%s1 + $0x20] sm:$0xff]
      %v276 = vld [vmem:[%s1 + $0x28] sm:$0xff]
      %v277 = vld [vmem:[%s1 + $0x30] sm:$0xff]
      %v278 = vld [vmem:[%s1 + $0x38] sm:$0xff]
      %v279 = vld [vmem:[%s1 + $0x40] sm:$0xff]
      %v280 = vld [vmem:[%s1 + $0x48] sm:$0xff]
      %v281 = vld [vmem:[%s1 + $0x50] sm:$0xff]
      %v282 = vld [vmem:[%s1 + $0x58] sm:$0xff]
      %v283 = vld [vmem:[%s1 + $0x60] sm:$0xff]
      %v284 = vld [vmem:[%s1 + $0x68] sm:$0xff]
      %v285 = vld [vmem:[%s1 + $0x70] sm:$0xff]
      %v286 = vld [vmem:[%s1 + $0x78] sm:$0xff]
      %v287 = vld [vmem:[%s1 + $0x80] sm:$0xff]
      %v288 = vld [vmem:[%s1 + $0x88] sm:$0xff]
      %v289 = vld [vmem:[%s1 + $0x90] sm:$0xff]
      %v290 = vld [vmem:[%s1 + $0x98] sm:$0xff]
      %v291 = vld [vmem:[%s1 + $0xa0] sm:$0xff]
      %v292 = vld [vmem:[%s1 + $0xa8] sm:$0xff]
      %v293 = vld [vmem:[%s1 + $0xb0] sm:$0xff]
      %v294 = vld [vmem:[%s1 + $0xb8] sm:$0xff]
      %v295 = vld [vmem:[%s1 + $0xc0] sm:$0xff]
      %v296 = vld [vmem:[%s1 + $0xc8] sm:$0xff]
      %v297 = vld [vmem:[%s1 + $0xd0] sm:$0xff]
      %v298 = vld [vmem:[%s1 + $0xd8] sm:$0xff]
      %v299 = vld [vmem:[%s1 + $0xe0] sm:$0xff]
      %v300 = vld [vmem:[%s1 + $0xe8] sm:$0xff]
      %v301 = vld [vmem:[%s1 + $0xf0] sm:$0xff]
      %v302 = vld [vmem:[%s1 + $0xf8] sm:$0xff]
      %v303 = vld [vmem:[%s1 + $0x100] sm:$0xff]
      %v304 = vld [vmem:[%s1 + $0x108] sm:$0xff]
      %v305 = vld [vmem:[%s1 + $0x110] sm:$0xff]
      %v306 = vld [vmem:[%s1 + $0x118] sm:$0xff]
      %v307 = vld [vmem:[%s1 + $0x120] sm:$0xff]
      %v308 = vld [vmem:[%s1 + $0x128] sm:$0xff]
      %v309 = vld [vmem:[%s1 + $0x130] sm:$0xff]
      %v310 = vld [vmem:[%s1 + $0x138] sm:$0xff]
      %v311 = vld [vmem:[%s1 + $0x140] sm:$0xff]
      %v312 = vld [vmem:[%s1 + $0x148] sm:$0xff]
      %v313 = vld [vmem:[%s1 + $0x150] sm:$0xff]
      %v314 = vld [vmem:[%s1 + $0x158] sm:$0xff]
      %v315 = vld [vmem:[%s1 + $0x160] sm:$0xff]
      %v316 = vld [vmem:[%s1 + $0x168] sm:$0xff]
      %v317 = vld [vmem:[%s1 + $0x170] sm:$0xff]
      %v318 = vld [vmem:[%s1 + $0x178] sm:$0xff]
      %v319 = vld [vmem:[%s1 + $0x180] sm:$0xff]
      %v320 = vld [vmem:[%s1 + $0x188] sm:$0xff]
      %v321 = vld [vmem:[%s1 + $0x190] sm:$0xff]
      %v322 = vld [vmem:[%s1 + $0x198] sm:$0xff]
      %v323 = vld [vmem:[%s1 + $0x1a0] sm:$0xff]
      %v324 = vld [vmem:[%s1 + $0x1a8] sm:$0xff]
      %v325 = vld [vmem:[%s1 + $0x1b0] sm:$0xff]
      %v326 = vld [vmem:[%s1 + $0x1b8] sm:$0xff]
      %v327 = vld [vmem:[%s1 + $0x1c0] sm:$0xff]
      %v328 = vld [vmem:[%s1 + $0x1c8] sm:$0xff]
      %v329 = vld [vmem:[%s1 + $0x1d0] sm:$0xff]
      %v330 = vld [vmem:[%s1 + $0x1d8] sm:$0xff]
      %v331 = vld [vmem:[%s1 + $0x1e0] sm:$0xff]
      %v332 = vld [vmem:[%s1 + $0x1e8] sm:$0xff]
      %v333 = vld [vmem:[%s1 + $0x1f0] sm:$0xff]
      %v334 = vld [vmem:[%s1 + $0x1f8] sm:$0xff]
      %v335 = vld [vmem:[%s1 + $0x200] sm:$0xff]
      %v336 = vld [vmem:[%s1 + $0x208] sm:$0xff]
      %v337 = vld [vmem:[%s1 + $0x210] sm:$0xff]
      %v338 = vld [vmem:[%s1 + $0x218] sm:$0xff]
      %v339 = vld [vmem:[%s1 + $0x220] sm:$0xff]
      %v340 = vld [vmem:[%s1 + $0x228] sm:$0xff]
      %v341 = vld [vmem:[%s1 + $0x230] sm:$0xff]
      %v342 = vld [vmem:[%s1 + $0x238] sm:$0xff]
      %v343 = vld [vmem:[%s1 + $0x240] sm:$0xff]
      %v344 = vld [vmem:[%s1 + $0x248] sm:$0xff]
      %v345 = vld [vmem:[%s1 + $0x250] sm:$0xff]
      %v346 = vld [vmem:[%s1 + $0x258] sm:$0xff]
      %v347 = vld [vmem:[%s1 + $0x260] sm:$0xff]
      %v348 = vld [vmem:[%s1 + $0x268] sm:$0xff]
      %v349 = vld [vmem:[%s1 + $0x270] sm:$0xff]
      %v350 = vld [vmem:[%s1 + $0x278] sm:$0xff]
      %v351 = vld [vmem:[%s1 + $0x280] sm:$0xff]
      %v352 = vld [vmem:[%s1 + $0x288] sm:$0xff]
      %v353 = vld [vmem:[%s1 + $0x290] sm:$0xff]
      %v354 = vld [vmem:[%s1 + $0x298] sm:$0xff]
      %v355 = vld [vmem:[%s1 + $0x2a0] sm:$0xff]
      %v356 = vld [vmem:[%s1 + $0x2a8] sm:$0xff]
      %v357 = vld [vmem:[%s1 + $0x2b0] sm:$0xff]
      %v358 = vld [vmem:[%s1 + $0x2b8] sm:$0xff]
      %v359 = vld [vmem:[%s1 + $0x2c0] sm:$0xff]
      %v360 = vld [vmem:[%s1 + $0x2c8] sm:$0xff]
      %v361 = vld [vmem:[%s1 + $0x2d0] sm:$0xff]
      %v362 = vld [vmem:[%s1 + $0x2d8] sm:$0xff]
      %v363 = vld [vmem:[%s1 + $0x2e0] sm:$0xff]
      %v364 = vld [vmem:[%s1 + $0x2e8] sm:$0xff]
      %v365 = vld [vmem:[%s1 + $0x2f0] sm:$0xff]
      %v366 = vld [vmem:[%s1 + $0x2f8] sm:$0xff]
      %v367 = vld [vmem:[%s1 + $0x300] sm:$0xff]
      %v368 = vld [vmem:[%s1 + $0x308] sm:$0xff]
      %v369 = vld [vmem:[%s1 + $0x310] sm:$0xff]
      %v370 = vld [vmem:[%s1 + $0x318] sm:$0xff]
      %v371 = vld [vmem:[%s1 + $0x320] sm:$0xff]
      %v372 = vld [vmem:[%s1 + $0x328] sm:$0xff]
      %v373 = vld [vmem:[%s1 + $0x330] sm:$0xff]
      %v374 = vld [vmem:[%s1 + $0x338] sm:$0xff]
      %v375 = vld [vmem:[%s1 + $0x340] sm:$0xff]
      %v376 = vld [vmem:[%s1 + $0x348] sm:$0xff]
      %v377 = vld [vmem:[%s1 + $0x350] sm:$0xff]
      %v378 = vld [vmem:[%s1 + $0x358] sm:$0xff]
      %v379 = vld [vmem:[%s1 + $0x360] sm:$0xff]
      %v380 = vld [vmem:[%s1 + $0x368] sm:$0xff]
      %v381 = vld [vmem:[%s1 + $0x370] sm:$0xff]
      %v382 = vld [vmem:[%s1 + $0x378] sm:$0xff]
      %v383 = vld [vmem:[%s1 + $0x380] sm:$0xff]
      %v384 = vld [vmem:[%s1 + $0x388] sm:$0xff]
      %v385 = vld [vmem:[%s1 + $0x390] sm:$0xff]
      %v386 = vld [vmem:[%s1 + $0x398] sm:$0xff]
      %v387 = vld [vmem:[%s1 + $0x3a0] sm:$0xff]
      %v388 = vld [vmem:[%s1 + $0x3a8] sm:$0xff]
      %v389 = vld [vmem:[%s1 + $0x3b0] sm:$0xff]
      %v390 = vld [vmem:[%s1 + $0x3b8] sm:$0xff]
      %v391 = vld [vmem:[%s1 + $0x3c0] sm:$0xff]
      %v392 = vld [vmem:[%s1 + $0x3c8] sm:$0xff]
      %v393 = vld [vmem:[%s1 + $0x3d0] sm:$0xff]
      %v394 = vld [vmem:[%s1 + $0x3d8] sm:$0xff]
      %v395 = vld [vmem:[%s1 + $0x3e0] sm:$0xff]
      %v396 = vld [vmem:[%s1 + $0x3e8] sm:$0xff]
      %v397 = vld [vmem:[%s1 + $0x3f0] sm:$0xff]
      %v398 = vld [vmem:[%s1 + $0x3f8] sm:$0xff]
      %v399 = vld [vmem:[%s1 + $0x400] sm:$0xff]
      %v400 = vld [vmem:[%s1 + $0x408] sm:$0xff]
      %v401 = vld [vmem:[%s1 + $0x410] sm:$0xff]
      %v402 = vld [vmem:[%s1 + $0x418] sm:$0xff]
      %v403 = vld [vmem:[%s1 + $0x420] sm:$0xff]
      %v404 = vld [vmem:[%s1 + $0x428] sm:$0xff]
      %v405 = vld [vmem:[%s1 + $0x430] sm:$0xff]
      %v406 = vld [vmem:[%s1 + $0x438] sm:$0xff]
      %v407 = vld [vmem:[%s1 + $0x440] sm:$0xff]
      %v408 = vld [vmem:[%s1 + $0x448] sm:$0xff]
      %v409 = vld [vmem:[%s1 + $0x450] sm:$0xff]
      %v410 = vld [vmem:[%s1 + $0x458] sm:$0xff]
      %v411 = vld [vmem:[%s1 + $0x460] sm:$0xff]
      %v412 = vld [vmem:[%s1 + $0x468] sm:$0xff]
      %v413 = vld [vmem:[%s1 + $0x470] sm:$0xff]
      %v414 = vld [vmem:[%s1 + $0x478] sm:$0xff]
      %v415 = vld [vmem:[%s191] sm:$0xff]
      %v416 = vld [vmem:[%s191 + $0x8] sm:$0xff]
      %v417 = vld [vmem:[%s191 + $0x10] sm:$0xff]
      %v418 = vld [vmem:[%s191 + $0x18] sm:$0xff]
      %v419 = vld [vmem:[%s191 + $0x20] sm:$0xff]
      %v420 = vld [vmem:[%s191 + $0x28] sm:$0xff]
      %v421 = vld [vmem:[%s191 + $0x30] sm:$0xff]
      %v422 = vld [vmem:[%s191 + $0x38] sm:$0xff]
      %423 = vmatprep.subr.mxu0 0.0
      %424 = vmatpush1.msra.mxu0 %v286
      %425 = vmatprep.subr.mxu0 0.0
      %426 = vmatpush1.msra.mxu0 %v285
      %427 = vmatprep.subr.mxu0 0.0
      %428 = vmatpush1.msra.mxu0 %v284
      %429 = vmatprep.subr.mxu0 0.0
      %430 = vmatpush1.msra.mxu0 %v283
      %431 = vmatprep.subr.mxu0 0.0
      %432 = vmatpush1.msra.mxu0 %v282
      %433 = vmatprep.subr.mxu0 0.0
      %434 = vmatpush1.msra.mxu0 %v281
      %435 = vmatprep.subr.mxu0 0.0
      %436 = vmatpush1.msra.mxu0 %v280
      %437 = vmatprep.subr.mxu0 0.0
      %438 = vmatpush1.msra.mxu0 %v279
      %439 = vmatprep.subr.mxu0 0.0
      %440 = vmatpush1.msra.mxu0 %v278
      %441 = vmatprep.subr.mxu0 0.0
      %442 = vmatpush1.msra.mxu0 %v277
      %443 = vmatprep.subr.mxu0 0.0
      %444 = vmatpush1.msra.mxu0 %v276
      %445 = vmatprep.subr.mxu0 0.0
      %446 = vmatpush1.msra.mxu0 %v275
      %447 = vmatprep.subr.mxu0 0.0
      %448 = vmatpush1.msra.mxu0 %v274
      %449 = vmatprep.subr.mxu0 0.0
      %450 = vmatpush1.msra.mxu0 %v273
      %451 = vmatprep.subr.mxu0 0.0
      %452 = vmatpush1.msra.mxu0 %v272
      %453 = vmatprep.subr.mxu0 0.0
      %454 = vmatpush1.msra.mxu0 %v271
      %455 = vmatprep.subr.mxu0 0.0
      %456 = vmatpush2.msra.mxu0 %v302
      %457 = vmatprep.subr.mxu0 0.0
      %458 = vmatpush2.msra.mxu0 %v301
      %459 = vmatprep.subr.mxu0 0.0
      %460 = vmatpush2.msra.mxu0 %v300
      %461 = vmatprep.subr.mxu0 0.0
      %462 = vmatpush2.msra.mxu0 %v299
      %463 = vmatprep.subr.mxu0 0.0
      %464 = vmatpush2.msra.mxu0 %v298
      %465 = vmatprep.subr.mxu0 0.0
      %466 = vmatpush2.msra.mxu0 %v297
      %467 = vmatprep.subr.mxu0 0.0
      %468 = vmatpush2.msra.mxu0 %v296
      %469 = vmatprep.subr.mxu0 0.0
      %470 = vmatpush2.msra.mxu0 %v295
      %471 = vmatprep.subr.mxu0 0.0
      %472 = vmatpush2.msra.mxu0 %v294
      %473 = vmatprep.subr.mxu0 0.0
      %474 = vmatpush2.msra.mxu0 %v293
      %475 = vmatprep.subr.mxu0 0.0
      %476 = vmatpush2.msra.mxu0 %v292
      %477 = vmatprep.subr.mxu0 0.0
      %478 = vmatpush2.msra.mxu0 %v291
      %479 = vmatprep.subr.mxu0 0.0
      %480 = vmatpush2.msra.mxu0 %v290
      %481 = vmatprep.subr.mxu0 0.0
      %482 = vmatpush2.msra.mxu0 %v289
      %483 = vmatprep.subr.mxu0 0.0
      %484 = vmatpush2.msra.mxu0 %v288
      %485 = vmatprep.subr.mxu0 0.0
      %486 = vmatpush2.msra.mxu0 %v287
      %487 = vmatprep.mubr.f32.mxu0 %v200
      %488 = vmatmul.mubr.f32.gmra.mxu0 %v199
      %v489 = vpop.f32.mrf.mxu0
      %v490 = vadd.f32 %v415, %v489
      %v491 = vpop.f32.mrf.mxu0
      %492 = vmatprep.mubr.f32.mxu0 %v209
      %493 = vmatmul.mubr.f32.gmra.mxu0 %v208
      %v494 = vpop.f32.mrf.mxu0
      %v495 = vadd.f32 %v416, %v494
      %v496 = vpop.f32.mrf.mxu0
      %497 = vmatprep.mubr.f32.mxu0 %v218
      %498 = vmatmul.mubr.f32.gmra.mxu0 %v217
      %v499 = vpop.f32.mrf.mxu0
      %v500 = vadd.f32 %v417, %v499
      %v501 = vpop.f32.mrf.mxu0
      %502 = vmatprep.mubr.f32.mxu0 %v227
      %503 = vmatmul.mubr.f32.gmra.mxu0 %v226
      %v504 = vpop.f32.mrf.mxu0
      %v505 = vadd.f32 %v418, %v504
      %v506 = vpop.f32.mrf.mxu0
      %507 = vmatprep.mubr.f32.mxu0 %v236
      %508 = vmatmul.mubr.f32.gmra.mxu0 %v235
      %v509 = vpop.f32.mrf.mxu0
      %v510 = vadd.f32 %v419, %v509
      %v511 = vpop.f32.mrf.mxu0
      %512 = vmatprep.mubr.f32.mxu0 %v245
      %513 = vmatmul.mubr.f32.gmra.mxu0 %v244
      %v514 = vpop.f32.mrf.mxu0
      %v515 = vadd.f32 %v420, %v514
      %v516 = vpop.f32.mrf.mxu0
      %517 = vmatprep.mubr.f32.mxu0 %v254
      %518 = vmatmul.mubr.f32.gmra.mxu0 %v253
      %v519 = vpop.f32.mrf.mxu0
      %v520 = vadd.f32 %v421, %v519
      %v521 = vpop.f32.mrf.mxu0
      %522 = vmatprep.mubr.f32.mxu0 %v263
      %523 = vmatmul.mubr.f32.gmra.mxu0 %v262
      %v524 = vpop.f32.mrf.mxu0
      %v525 = vadd.f32 %v422, %v524
      %v526 = vpop.f32.mrf.mxu0
      %527 = vdwg.mxu0
      %528 = vmatprep.subr.mxu0 0.0
      %529 = vmatpush1.msra.mxu0 %v318
      %530 = vmatprep.subr.mxu0 0.0
      %531 = vmatpush1.msra.mxu0 %v317
      %532 = vmatprep.subr.mxu0 0.0
      %533 = vmatpush1.msra.mxu0 %v316
      %534 = vmatprep.subr.mxu0 0.0
      %535 = vmatpush1.msra.mxu0 %v315
      %536 = vmatprep.subr.mxu0 0.0
      %537 = vmatpush1.msra.mxu0 %v314
      %538 = vmatprep.subr.mxu0 0.0
      %539 = vmatpush1.msra.mxu0 %v313
      %540 = vmatprep.subr.mxu0 0.0
      %541 = vmatpush1.msra.mxu0 %v312
      %542 = vmatprep.subr.mxu0 0.0
      %543 = vmatpush1.msra.mxu0 %v311
      %544 = vmatprep.subr.mxu0 0.0
      %545 = vmatpush1.msra.mxu0 %v310
      %546 = vmatprep.subr.mxu0 0.0
      %547 = vmatpush1.msra.mxu0 %v309
      %548 = vmatprep.subr.mxu0 0.0
      %549 = vmatpush1.msra.mxu0 %v308
      %550 = vmatprep.subr.mxu0 0.0
      %551 = vmatpush1.msra.mxu0 %v307
      %552 = vmatprep.subr.mxu0 0.0
      %553 = vmatpush1.msra.mxu0 %v306
      %554 = vmatprep.subr.mxu0 0.0
      %555 = vmatpush1.msra.mxu0 %v305
      %556 = vmatprep.subr.mxu0 0.0
      %557 = vmatpush1.msra.mxu0 %v304
      %558 = vmatprep.subr.mxu0 0.0
      %559 = vmatpush1.msra.mxu0 %v303
      %560 = vmatprep.subr.mxu0 0.0
      %561 = vmatpush2.msra.mxu0 %v334
      %562 = vmatprep.subr.mxu0 0.0
      %563 = vmatpush2.msra.mxu0 %v333
      %564 = vmatprep.subr.mxu0 0.0
      %565 = vmatpush2.msra.mxu0 %v332
      %566 = vmatprep.subr.mxu0 0.0
      %567 = vmatpush2.msra.mxu0 %v331
      %568 = vmatprep.subr.mxu0 0.0
      %569 = vmatpush2.msra.mxu0 %v330
      %570 = vmatprep.subr.mxu0 0.0
      %571 = vmatpush2.msra.mxu0 %v329
      %572 = vmatprep.subr.mxu0 0.0
      %573 = vmatpush2.msra.mxu0 %v328
      %574 = vmatprep.subr.mxu0 0.0
      %575 = vmatpush2.msra.mxu0 %v327
      %576 = vmatprep.subr.mxu0 0.0
      %577 = vmatpush2.msra.mxu0 %v326
      %578 = vmatprep.subr.mxu0 0.0
      %579 = vmatpush2.msra.mxu0 %v325
      %580 = vmatprep.subr.mxu0 0.0
      %581 = vmatpush2.msra.mxu0 %v324
      %582 = vmatprep.subr.mxu0 0.0
      %583 = vmatpush2.msra.mxu0 %v323
      %584 = vmatprep.subr.mxu0 0.0
      %585 = vmatpush2.msra.mxu0 %v322
      %586 = vmatprep.subr.mxu0 0.0
      %587 = vmatpush2.msra.mxu0 %v321
      %588 = vmatprep.subr.mxu0 0.0
      %589 = vmatpush2.msra.mxu0 %v320
      %590 = vmatprep.subr.mxu0 0.0
      %591 = vmatpush2.msra.mxu0 %v319
      %592 = vmatprep.mubr.f32.mxu0 %v202
      %593 = vmatmul.mubr.f32.gmra.mxu0 %v201
      %v594 = vpop.f32.mrf.mxu0
      %v595 = vadd.f32 %v490, %v594
      %v596 = vpop.f32.mrf.mxu0
      %597 = vmatprep.mubr.f32.mxu0 %v211
      %598 = vmatmul.mubr.f32.gmra.mxu0 %v210
      %v599 = vpop.f32.mrf.mxu0
      %v600 = vadd.f32 %v495, %v599
      %v601 = vpop.f32.mrf.mxu0
      %602 = vmatprep.mubr.f32.mxu0 %v220
      %603 = vmatmul.mubr.f32.gmra.mxu0 %v219
      %v604 = vpop.f32.mrf.mxu0
      %v605 = vadd.f32 %v500, %v604
      %v606 = vpop.f32.mrf.mxu0
      %607 = vmatprep.mubr.f32.mxu0 %v229
      %608 = vmatmul.mubr.f32.gmra.mxu0 %v228
      %v609 = vpop.f32.mrf.mxu0
      %v610 = vadd.f32 %v505, %v609
      %v611 = vpop.f32.mrf.mxu0
      %612 = vmatprep.mubr.f32.mxu0 %v238
      %613 = vmatmul.mubr.f32.gmra.mxu0 %v237
      %v614 = vpop.f32.mrf.mxu0
      %v615 = vadd.f32 %v510, %v614
      %v616 = vpop.f32.mrf.mxu0
      %617 = vmatprep.mubr.f32.mxu0 %v247
      %618 = vmatmul.mubr.f32.gmra.mxu0 %v246
      %v619 = vpop.f32.mrf.mxu0
      %v620 = vadd.f32 %v515, %v619
      %v621 = vpop.f32.mrf.mxu0
      %622 = vmatprep.mubr.f32.mxu0 %v256
      %623 = vmatmul.mubr.f32.gmra.mxu0 %v255
      %v624 = vpop.f32.mrf.mxu0
      %v625 = vadd.f32 %v520, %v624
      %v626 = vpop.f32.mrf.mxu0
      %627 = vmatprep.mubr.f32.mxu0 %v265
      %628 = vmatmul.mubr.f32.gmra.mxu0 %v264
      %v629 = vpop.f32.mrf.mxu0
      %v630 = vadd.f32 %v525, %v629
      %v631 = vpop.f32.mrf.mxu0
      %632 = vdwg.mxu0
      %633 = vmatprep.subr.mxu0 0.0
      %634 = vmatpush1.msra.mxu0 %v350
      %635 = vmatprep.subr.mxu0 0.0
      %636 = vmatpush1.msra.mxu0 %v349
      %637 = vmatprep.subr.mxu0 0.0
      %638 = vmatpush1.msra.mxu0 %v348
      %639 = vmatprep.subr.mxu0 0.0
      %640 = vmatpush1.msra.mxu0 %v347
      %641 = vmatprep.subr.mxu0 0.0
      %642 = vmatpush1.msra.mxu0 %v346
      %643 = vmatprep.subr.mxu0 0.0
      %644 = vmatpush1.msra.mxu0 %v345
      %645 = vmatprep.subr.mxu0 0.0
      %646 = vmatpush1.msra.mxu0 %v344
      %647 = vmatprep.subr.mxu0 0.0
      %648 = vmatpush1.msra.mxu0 %v343
      %649 = vmatprep.subr.mxu0 0.0
      %650 = vmatpush1.msra.mxu0 %v342
      %651 = vmatprep.subr.mxu0 0.0
      %652 = vmatpush1.msra.mxu0 %v341
      %653 = vmatprep.subr.mxu0 0.0
      %654 = vmatpush1.msra.mxu0 %v340
      %655 = vmatprep.subr.mxu0 0.0
      %656 = vmatpush1.msra.mxu0 %v339
      %657 = vmatprep.subr.mxu0 0.0
      %658 = vmatpush1.msra.mxu0 %v338
      %659 = vmatprep.subr.mxu0 0.0
      %660 = vmatpush1.msra.mxu0 %v337
      %661 = vmatprep.subr.mxu0 0.0
      %662 = vmatpush1.msra.mxu0 %v336
      %663 = vmatprep.subr.mxu0 0.0
      %664 = vmatpush1.msra.mxu0 %v335
      %665 = vmatprep.subr.mxu0 0.0
      %666 = vmatpush2.msra.mxu0 %v366
      %667 = vmatprep.subr.mxu0 0.0
      %668 = vmatpush2.msra.mxu0 %v365
      %669 = vmatprep.subr.mxu0 0.0
      %670 = vmatpush2.msra.mxu0 %v364
      %671 = vmatprep.subr.mxu0 0.0
      %672 = vmatpush2.msra.mxu0 %v363
      %673 = vmatprep.subr.mxu0 0.0
      %674 = vmatpush2.msra.mxu0 %v362
      %675 = vmatprep.subr.mxu0 0.0
      %676 = vmatpush2.msra.mxu0 %v361
      %677 = vmatprep.subr.mxu0 0.0
      %678 = vmatpush2.msra.mxu0 %v360
      %679 = vmatprep.subr.mxu0 0.0
      %680 = vmatpush2.msra.mxu0 %v359
      %681 = vmatprep.subr.mxu0 0.0
      %682 = vmatpush2.msra.mxu0 %v358
      %683 = vmatprep.subr.mxu0 0.0
      %684 = vmatpush2.msra.mxu0 %v357
      %685 = vmatprep.subr.mxu0 0.0
      %686 = vmatpush2.msra.mxu0 %v356
      %687 = vmatprep.subr.mxu0 0.0
      %688 = vmatpush2.msra.mxu0 %v355
      %689 = vmatprep.subr.mxu0 0.0
      %690 = vmatpush2.msra.mxu0 %v354
      %691 = vmatprep.subr.mxu0 0.0
      %692 = vmatpush2.msra.mxu0 %v353
      %693 = vmatprep.subr.mxu0 0.0
      %694 = vmatpush2.msra.mxu0 %v352
      %695 = vmatprep.subr.mxu0 0.0
      %696 = vmatpush2.msra.mxu0 %v351
      %697 = vmatprep.mubr.f32.mxu0 %v204
      %698 = vmatmul.mubr.f32.gmra.mxu0 %v203
      %v699 = vpop.f32.mrf.mxu0
      %v700 = vadd.f32 %v595, %v699
      %v701 = vpop.f32.mrf.mxu0
      %702 = vmatprep.mubr.f32.mxu0 %v213
      %703 = vmatmul.mubr.f32.gmra.mxu0 %v212
      %v704 = vpop.f32.mrf.mxu0
      %v705 = vadd.f32 %v600, %v704
      %v706 = vpop.f32.mrf.mxu0
      %707 = vmatprep.mubr.f32.mxu0 %v222
      %708 = vmatmul.mubr.f32.gmra.mxu0 %v221
      %v709 = vpop.f32.mrf.mxu0
      %v710 = vadd.f32 %v605, %v709
      %v711 = vpop.f32.mrf.mxu0
      %712 = vmatprep.mubr.f32.mxu0 %v231
      %713 = vmatmul.mubr.f32.gmra.mxu0 %v230
      %v714 = vpop.f32.mrf.mxu0
      %v715 = vadd.f32 %v610, %v714
      %v716 = vpop.f32.mrf.mxu0
      %717 = vmatprep.mubr.f32.mxu0 %v240
      %718 = vmatmul.mubr.f32.gmra.mxu0 %v239
      %v719 = vpop.f32.mrf.mxu0
      %v720 = vadd.f32 %v615, %v719
      %v721 = vpop.f32.mrf.mxu0
      %722 = vmatprep.mubr.f32.mxu0 %v249
      %723 = vmatmul.mubr.f32.gmra.mxu0 %v248
      %v724 = vpop.f32.mrf.mxu0
      %v725 = vadd.f32 %v620, %v724
      %v726 = vpop.f32.mrf.mxu0
      %727 = vmatprep.mubr.f32.mxu0 %v258
      %728 = vmatmul.mubr.f32.gmra.mxu0 %v257
      %v729 = vpop.f32.mrf.mxu0
      %v730 = vadd.f32 %v625, %v729
      %v731 = vpop.f32.mrf.mxu0
      %732 = vmatprep.mubr.f32.mxu0 %v267
      %733 = vmatmul.mubr.f32.gmra.mxu0 %v266
      %v734 = vpop.f32.mrf.mxu0
      %v735 = vadd.f32 %v630, %v734
      %v736 = vpop.f32.mrf.mxu0
      %737 = vdwg.mxu0
      %738 = vmatprep.subr.mxu0 0.0
      %739 = vmatpush1.msra.mxu0 %v382
      %740 = vmatprep.subr.mxu0 0.0
      %741 = vmatpush1.msra.mxu0 %v381
      %742 = vmatprep.subr.mxu0 0.0
      %743 = vmatpush1.msra.mxu0 %v380
      %744 = vmatprep.subr.mxu0 0.0
      %745 = vmatpush1.msra.mxu0 %v379
      %746 = vmatprep.subr.mxu0 0.0
      %747 = vmatpush1.msra.mxu0 %v378
      %748 = vmatprep.subr.mxu0 0.0
      %749 = vmatpush1.msra.mxu0 %v377
      %750 = vmatprep.subr.mxu0 0.0
      %751 = vmatpush1.msra.mxu0 %v376
      %752 = vmatprep.subr.mxu0 0.0
      %753 = vmatpush1.msra.mxu0 %v375
      %754 = vmatprep.subr.mxu0 0.0
      %755 = vmatpush1.msra.mxu0 %v374
      %756 = vmatprep.subr.mxu0 0.0
      %757 = vmatpush1.msra.mxu0 %v373
      %758 = vmatprep.subr.mxu0 0.0
      %759 = vmatpush1.msra.mxu0 %v372
      %760 = vmatprep.subr.mxu0 0.0
      %761 = vmatpush1.msra.mxu0 %v371
      %762 = vmatprep.subr.mxu0 0.0
      %763 = vmatpush1.msra.mxu0 %v370
      %764 = vmatprep.subr.mxu0 0.0
      %765 = vmatpush1.msra.mxu0 %v369
      %766 = vmatprep.subr.mxu0 0.0
      %767 = vmatpush1.msra.mxu0 %v368
      %768 = vmatprep.subr.mxu0 0.0
      %769 = vmatpush1.msra.mxu0 %v367
      %770 = vmatprep.subr.mxu0 0.0
      %771 = vmatpush2.msra.mxu0 %v398
      %772 = vmatprep.subr.mxu0 0.0
      %773 = vmatpush2.msra.mxu0 %v397
      %774 = vmatprep.subr.mxu0 0.0
      %775 = vmatpush2.msra.mxu0 %v396
      %776 = vmatprep.subr.mxu0 0.0
      %777 = vmatpush2.msra.mxu0 %v395
      %778 = vmatprep.subr.mxu0 0.0
      %779 = vmatpush2.msra.mxu0 %v394
      %780 = vmatprep.subr.mxu0 0.0
      %781 = vmatpush2.msra.mxu0 %v393
      %782 = vmatprep.subr.mxu0 0.0
      %783 = vmatpush2.msra.mxu0 %v392
      %784 = vmatprep.subr.mxu0 0.0
      %785 = vmatpush2.msra.mxu0 %v391
      %786 = vmatprep.subr.mxu0 0.0
      %787 = vmatpush2.msra.mxu0 %v390
      %788 = vmatprep.subr.mxu0 0.0
      %789 = vmatpush2.msra.mxu0 %v389
      %790 = vmatprep.subr.mxu0 0.0
      %791 = vmatpush2.msra.mxu0 %v388
      %792 = vmatprep.subr.mxu0 0.0
      %793 = vmatpush2.msra.mxu0 %v387
      %794 = vmatprep.subr.mxu0 0.0
      %795 = vmatpush2.msra.mxu0 %v386
      %796 = vmatprep.subr.mxu0 0.0
      %797 = vmatpush2.msra.mxu0 %v385
      %798 = vmatprep.subr.mxu0 0.0
      %799 = vmatpush2.msra.mxu0 %v384
      %800 = vmatprep.subr.mxu0 0.0
      %801 = vmatpush2.msra.mxu0 %v383
      %802 = vmatprep.mubr.f32.mxu0 %v206
      %803 = vmatmul.mubr.f32.gmra.mxu0 %v205
      %v804 = vpop.f32.mrf.mxu0
      %v805 = vadd.f32 %v700, %v804
      %v806 = vpop.f32.mrf.mxu0
      %807 = vmatprep.mubr.f32.mxu0 %v215
      %808 = vmatmul.mubr.f32.gmra.mxu0 %v214
      %v809 = vpop.f32.mrf.mxu0
      %v810 = vadd.f32 %v705, %v809
      %v811 = vpop.f32.mrf.mxu0
      %812 = vmatprep.mubr.f32.mxu0 %v224
      %813 = vmatmul.mubr.f32.gmra.mxu0 %v223
      %v814 = vpop.f32.mrf.mxu0
      %v815 = vadd.f32 %v710, %v814
      %v816 = vpop.f32.mrf.mxu0
      %817 = vmatprep.mubr.f32.mxu0 %v233
      %818 = vmatmul.mubr.f32.gmra.mxu0 %v232
      %v819 = vpop.f32.mrf.mxu0
      %v820 = vadd.f32 %v715, %v819
      %v821 = vpop.f32.mrf.mxu0
      %822 = vmatprep.mubr.f32.mxu0 %v242
      %823 = vmatmul.mubr.f32.gmra.mxu0 %v241
      %v824 = vpop.f32.mrf.mxu0
      %v825 = vadd.f32 %v720, %v824
      %v826 = vpop.f32.mrf.mxu0
      %827 = vmatprep.mubr.f32.mxu0 %v251
      %828 = vmatmul.mubr.f32.gmra.mxu0 %v250
      %v829 = vpop.f32.mrf.mxu0
      %v830 = vadd.f32 %v725, %v829
      %v831 = vpop.f32.mrf.mxu0
      %832 = vmatprep.mubr.f32.mxu0 %v260
      %833 = vmatmul.mubr.f32.gmra.mxu0 %v259
      %v834 = vpop.f32.mrf.mxu0
      %v835 = vadd.f32 %v730, %v834
      %v836 = vpop.f32.mrf.mxu0
      %837 = vmatprep.mubr.f32.mxu0 %v269
      %838 = vmatmul.mubr.f32.gmra.mxu0 %v268
      %v839 = vpop.f32.mrf.mxu0
      %v840 = vadd.f32 %v735, %v839
      %v841 = vpop.f32.mrf.mxu0
      %842 = vdwg.mxu0
      %843 = vmatprep.subr.mxu0 0.0
      %844 = vmatpush1.msra.mxu0 %v414
      %845 = vmatprep.subr.mxu0 0.0
      %846 = vmatpush1.msra.mxu0 %v413
      %847 = vmatprep.subr.mxu0 0.0
      %848 = vmatpush1.msra.mxu0 %v412
      %849 = vmatprep.subr.mxu0 0.0
      %850 = vmatpush1.msra.mxu0 %v411
      %851 = vmatprep.subr.mxu0 0.0
      %852 = vmatpush1.msra.mxu0 %v410
      %853 = vmatprep.subr.mxu0 0.0
      %854 = vmatpush1.msra.mxu0 %v409
      %855 = vmatprep.subr.mxu0 0.0
      %856 = vmatpush1.msra.mxu0 %v408
      %857 = vmatprep.subr.mxu0 0.0
      %858 = vmatpush1.msra.mxu0 %v407
      %859 = vmatprep.subr.mxu0 0.0
      %860 = vmatpush1.msra.mxu0 %v406
      %861 = vmatprep.subr.mxu0 0.0
      %862 = vmatpush1.msra.mxu0 %v405
      %863 = vmatprep.subr.mxu0 0.0
      %864 = vmatpush1.msra.mxu0 %v404
      %865 = vmatprep.subr.mxu0 0.0
      %866 = vmatpush1.msra.mxu0 %v403
      %867 = vmatprep.subr.mxu0 0.0
      %868 = vmatpush1.msra.mxu0 %v402
      %869 = vmatprep.subr.mxu0 0.0
      %870 = vmatpush1.msra.mxu0 %v401
      %871 = vmatprep.subr.mxu0 0.0
      %872 = vmatpush1.msra.mxu0 %v400
      %873 = vmatprep.subr.mxu0 0.0
      %874 = vmatpush1.msra.mxu0 %v399
      %875 = vmatprep.subr.mxu0 0.0
      %876 = vmatpush2.msra.mxu0 0.0
      %877 = vmatprep.subr.mxu0 0.0
      %878 = vmatpush2.msra.mxu0 0.0
      %879 = vmatprep.subr.mxu0 0.0
      %880 = vmatpush2.msra.mxu0 0.0
      %881 = vmatprep.subr.mxu0 0.0
      %882 = vmatpush2.msra.mxu0 0.0
      %883 = vmatprep.subr.mxu0 0.0
      %884 = vmatpush2.msra.mxu0 0.0
      %885 = vmatprep.subr.mxu0 0.0
      %886 = vmatpush2.msra.mxu0 0.0
      %887 = vmatprep.subr.mxu0 0.0
      %888 = vmatpush2.msra.mxu0 0.0
      %889 = vmatprep.subr.mxu0 0.0
      %890 = vmatpush2.msra.mxu0 0.0
      %891 = vmatprep.subr.mxu0 0.0
      %892 = vmatpush2.msra.mxu0 0.0
      %893 = vmatprep.subr.mxu0 0.0
      %894 = vmatpush2.msra.mxu0 0.0
      %895 = vmatprep.subr.mxu0 0.0
      %896 = vmatpush2.msra.mxu0 0.0
      %897 = vmatprep.subr.mxu0 0.0
      %898 = vmatpush2.msra.mxu0 0.0
      %899 = vmatprep.subr.mxu0 0.0
      %900 = vmatpush2.msra.mxu0 0.0
      %901 = vmatprep.subr.mxu0 0.0
      %902 = vmatpush2.msra.mxu0 0.0
      %903 = vmatprep.subr.mxu0 0.0
      %904 = vmatpush2.msra.mxu0 0.0
      %905 = vmatprep.subr.mxu0 0.0
      %906 = vmatpush2.msra.mxu0 0.0
      %907 = vmatprep.mubr.f32.mxu0 0.0
      %908 = vmatmul.mubr.f32.gmra.mxu0 %v207
      %v909 = vpop.f32.mrf.mxu0
      %v910 = vadd.f32 %v805, %v909
      %v911 = vpop.f32.mrf.mxu0
      %912 = vmatprep.mubr.f32.mxu0 0.0
      %913 = vmatmul.mubr.f32.gmra.mxu0 %v216
      %v914 = vpop.f32.mrf.mxu0
      %v915 = vadd.f32 %v810, %v914
      %v916 = vpop.f32.mrf.mxu0
      %917 = vmatprep.mubr.f32.mxu0 0.0
      %918 = vmatmul.mubr.f32.gmra.mxu0 %v225
      %v919 = vpop.f32.mrf.mxu0
      %v920 = vadd.f32 %v815, %v919
      %v921 = vpop.f32.mrf.mxu0
      %922 = vmatprep.mubr.f32.mxu0 0.0
      %923 = vmatmul.mubr.f32.gmra.mxu0 %v234
      %v924 = vpop.f32.mrf.mxu0
      %v925 = vadd.f32 %v820, %v924
      %v926 = vpop.f32.mrf.mxu0
      %927 = vmatprep.mubr.f32.mxu0 0.0
      %928 = vmatmul.mubr.f32.gmra.mxu0 %v243
      %v929 = vpop.f32.mrf.mxu0
      %v930 = vadd.f32 %v825, %v929
      %v931 = vpop.f32.mrf.mxu0
      %932 = vmatprep.mubr.f32.mxu0 0.0
      %933 = vmatmul.mubr.f32.gmra.mxu0 %v252
      %v934 = vpop.f32.mrf.mxu0
      %v935 = vadd.f32 %v830, %v934
      %v936 = vpop.f32.mrf.mxu0
      %937 = vmatprep.mubr.f32.mxu0 0.0
      %938 = vmatmul.mubr.f32.gmra.mxu0 %v261
      %v939 = vpop.f32.mrf.mxu0
      %v940 = vadd.f32 %v835, %v939
      %v941 = vpop.f32.mrf.mxu0
      %942 = vmatprep.mubr.f32.mxu0 0.0
      %943 = vmatmul.mubr.f32.gmra.mxu0 %v270
      %v944 = vpop.f32.mrf.mxu0
      %v945 = vadd.f32 %v840, %v944
      %v946 = vpop.f32.mrf.mxu0
      %947 = vdwg.mxu0
      %948 = vst [vmem:[%s197] sm:$0xff] %v910
      %949 = vst [vmem:[%s197 + $0x8] sm:$0xff] %v915
      %950 = vst [vmem:[%s197 + $0x10] sm:$0xff] %v920
      %951 = vst [vmem:[%s197 + $0x18] sm:$0xff] %v925
      %952 = vst [vmem:[%s197 + $0x20] sm:$0xff] %v930
      %953 = vst [vmem:[%s197 + $0x28] sm:$0xff] %v935
      %954 = vst [vmem:[%s197 + $0x30] sm:$0xff] %v940
      %955 = vst [vmem:[%s197 + $0x38] sm:$0xff] %v945
      %s956 = smul.u32 8, %s14
      %p957 = scmp.lt.s32.totalorder %s956, 15
      %s958 = scalar_select %p957, %s956, 15
      %s959 = smul.addr %s958, 8
      %s960 = scalar_lea.vmem %s3, %s959
      // Predicated region
      $region33: #{a_call__.5} parent=31 // pred_check
        %p961 = pneg %p105
      $region34: #{a_call__.5} parent=31 // pred_check_branch
        %963 = sbr.rel (%p961) target = $region36
      $region35: #{a_call__.5} parent=31 // pred_region
        %s964 = smul.u32 8, %s14
      $region36: #{a_call__.5} parent=31 // pred_fallthru
        _
    $region32: #{a_call__.5} parent=5 // pred_fallthru
      _
    %p965 = scmp.le.s32.totalorder 2, %s9
    // Predicated region
    $region37: #{a_call__.5} parent=5 // pred_check
      %p966 = pneg %p965
    $region38: #{a_call__.5} parent=5 // pred_check_branch
      %968 = sbr.rel (%p966) target = $region40
    $region39: #{a_call__.5} parent=5 // pred_region
      %s969 = ssub.s32 %s9, 2
      // Predicated region
      $region41: #{a_call__.5} parent=39 // pred_check
        %p970 = pneg %p111
      $region42: #{a_call__.5} parent=39 // pred_check_branch
        %972 = sbr.rel (%p970) target = $region44
      $region43: #{a_call__.5} parent=39 // pred_region
        %s973 = smul.u32 8, %s15
        %p974 = scmp.lt.s32.totalorder %s973, 15
        %s975 = scalar_select %p974, %s973, 15
        %s976 = smul.addr %s975, 8
        %s977 = scalar_lea.vmem %s3, %s976
      $region44: #{a_call__.5} parent=39 // pred_fallthru
        _
    $region40: #{a_call__.5} parent=5 // pred_fallthru
      _
  $region6: #{a_call__.5} parent=0 // loop_footer
    %s13 = sadd.s32 1, %s9
  $region7: #{a_call__.5} parent=0 // loop_footer_branch
    %8 = sbr.rel target = $region3
  $region8: #{a_call__.5} parent=0 // loop_exit
    _

</llo_original>
